<compile_context>
chip_gen: v7x
topology: tpu7x:2x2x1
jax: 0.10.0
libtpu: 0.0.40
codegen_flags: <defaults>
</compile_context>

<pallas_src>
import functools

import jax
import jax.numpy as jnp
from jax import lax
from jax.experimental import pallas as pl
from jax.experimental.pallas import tpu as pltpu


def _round_up(v, m):
    return (v + m - 1) // m * m


def gnn_cont_kernel(y0_ref, ahat_ref, wt_ref, wh_ref, bg_ref, out_ref, *, n_steps):
    """Whole Euler trajectory in one kernel invocation (no grid).

    y0_ref   : [N, Hp]           initial state (already embedded, lane-padded)
    ahat_ref : [N, N]            dense normalized adjacency D^-1/2 (A+I) D^-1/2
    wt_ref   : [1, Hp]           W_gcn row multiplying the time channel
    wh_ref   : [Hp, Hp]          W_gcn rows multiplying the hidden state
    bg_ref   : [1, Hp]           GCN bias
    out_ref  : [n_steps, N, Hp]  trajectory (single slab writeback)
    """
    dt = 1.0 / float(n_steps - 1)

    y0 = y0_ref[...]
    out_ref[0] = y0

    def body(k, y):
        t = k.astype(jnp.float32) * dt
        # cat([t*ones, y], 1) @ W_gcn  ->  t * W_gcn[0] + y @ W_gcn[1:]
        z = (jnp.dot(y, wh_ref[...], preferred_element_type=jnp.float32)
             + t * wt_ref[...])
        # GCN propagate: Ahat @ z + b
        f = (jnp.dot(ahat_ref[...], z, preferred_element_type=jnp.float32)
             + bg_ref[...])
        y_new = y + dt * f
        out_ref[k + 1] = y_new
        return y_new

    # Short, fixed trip count -> unroll for LLO scheduler visibility.
    lax.fori_loop(0, n_steps - 1, body, y0, unroll=(n_steps <= 33))


def gnn_cont_forward(x, ahat, w_emb, b_emb, w_gcn, b_gcn, *, n_steps):
    N, _ = x.shape
    H = w_emb.shape[1]

    # Embedding hoisted out of the kernel (used exactly once).
    y0 = x.astype(jnp.float32) @ w_emb.astype(jnp.float32) + b_emb.astype(jnp.float32)[None, :]

    if n_steps == 1:
        return y0[None]

    # Lane-pad the hidden dimension to a multiple of 128. Zero padding keeps
    # the padded columns exactly zero through the whole recurrence.
    Hp = _round_up(H, 128)
    pad = Hp - H
    y0p = jnp.pad(y0, ((0, 0), (0, pad)))
    wt = jnp.pad(w_gcn[0:1, :].astype(jnp.float32), ((0, 0), (0, pad)))     # [1, Hp]
    wh = jnp.pad(w_gcn[1:, :].astype(jnp.float32), ((0, pad), (0, pad)))    # [Hp, Hp]
    bg = jnp.pad(b_gcn.astype(jnp.float32).reshape(1, H), ((0, 0), (0, pad)))
    ahat = ahat.astype(jnp.float32)

    kernel = functools.partial(gnn_cont_kernel, n_steps=n_steps)

    # Raise the scoped-VMEM limit only if the footprint actually needs it
    # (not at demo shapes: everything here is a few hundred KiB).
    footprint_bytes = 4 * (y0p.size + ahat.size + wt.size + wh.size + bg.size
                           + n_steps * N * Hp) * 2  # x2 headroom for buffering
    compiler_params = None
    if footprint_bytes > (8 << 20):
        compiler_params = pltpu.CompilerParams(
            vmem_limit_bytes=min(int(footprint_bytes * 1.5), 96 << 20))

    vmem = pltpu.MemorySpace.VMEM
    traj = pl.pallas_call(
        kernel,
        out_shape=jax.ShapeDtypeStruct((n_steps, N, Hp), jnp.float32),
        in_specs=[
            pl.BlockSpec(memory_space=vmem),   # y0
            pl.BlockSpec(memory_space=vmem),   # Ahat
            pl.BlockSpec(memory_space=vmem),   # W_gcn time row
            pl.BlockSpec(memory_space=vmem),   # W_gcn hidden rows
            pl.BlockSpec(memory_space=vmem),   # b_gcn
        ],
        out_specs=pl.BlockSpec(memory_space=vmem),
        compiler_params=compiler_params,
    )(y0p, ahat, wt, wh, bg)

    return traj[:, :, :H]


def build_ahat(edge_index, num_nodes):
    """Dense D^{-1/2} (A + I) D^{-1/2}, matching GCNConv's default gcn_norm
    (add_self_loops=True) for graphs whose edge_index has no pre-existing
    self-loops / multi-edges (true for the demo graph below)."""
    src, dst = edge_index
    a = jnp.zeros((num_nodes, num_nodes), jnp.float32).at[dst, src].add(1.0)
    a = jnp.minimum(a, 1.0)                        # dedupe multi-edges
    a = a + jnp.eye(num_nodes, dtype=jnp.float32)  # self-loops
    deg = a.sum(axis=1)
    dinv = 1.0 / jnp.sqrt(deg)
    return dinv[:, None] * a * dinv[None, :]


def reference_forward(x, ahat, w_emb, b_emb, w_gcn, b_gcn, n_steps):
    """Pure-JAX reference mirroring the PyTorch module (Euler odeint)."""
    dt = 1.0 / (n_steps - 1)
    y = x @ w_emb + b_emb
    traj = [y]
    for k in range(n_steps - 1):
        t = k * dt
        tt = jnp.ones((x.shape[0], 1), jnp.float32) * t
        h = jnp.concatenate([tt, y], axis=1)
        f = ahat @ (h @ w_gcn) + b_gcn
        y = y + dt * f
        traj.append(y)
    return jnp.stack(traj, axis=0)


if __name__ == "__main__":
    # Small shapes consistent with the module's forward.
    N = 16                # nodes
    F = 8                 # num_node_features
    H = 32                # hidden_dim
    N_STEPS = 8           # n_steps (time_steps = linspace(0, 1, 8))

    key = jax.random.PRNGKey(0)
    k_x, k_we, k_be, k_wg, k_bg = jax.random.split(key, 5)

    x = jax.random.normal(k_x, (N, F), jnp.float32)

    # Deterministic parameter init (synthetic; shapes from __init__).
    w_emb = jax.random.normal(k_we, (F, H), jnp.float32) * 0.1
    b_emb = jax.random.normal(k_be, (H,), jnp.float32) * 0.1
    w_gcn = jax.random.normal(k_wg, (H + 1, H), jnp.float32) * 0.1   # GCNConv(H+1, H)
    b_gcn = jax.random.normal(k_bg, (H,), jnp.float32) * 0.1

    # Simple symmetric ring graph as edge_index [2, E].
    idx = jnp.arange(N)
    src = jnp.concatenate([idx, (idx + 1) % N])
    dst = jnp.concatenate([(idx + 1) % N, idx])
    edge_index = jnp.stack([src, dst], axis=0)

    ahat = build_ahat(edge_index, N)

    out = gnn_cont_forward(x, ahat, w_emb, b_emb, w_gcn, b_gcn, n_steps=N_STEPS)
    out = jax.block_until_ready(out)

    ref = reference_forward(x, ahat, w_emb, b_emb, w_gcn, b_gcn, N_STEPS)
    assert out.shape == (N_STEPS, N, H)
    assert jnp.allclose(out, ref, atol=1e-5, rtol=1e-5)

    print("KERNEL_OK")
</pallas_src>

<mosaic_0001>
module attributes {stable_mosaic.version = 11 : i64} {
  func.func @gnn_cont_kernel(%arg0: memref<16x128xf32, #tpu.memory_space<vmem>>, %arg1: memref<16x16xf32, #tpu.memory_space<vmem>>, %arg2: memref<1x128xf32, #tpu.memory_space<vmem>>, %arg3: memref<128x128xf32, #tpu.memory_space<vmem>>, %arg4: memref<1x128xf32, #tpu.memory_space<vmem>>, %arg5: memref<8x16x128xf32, #tpu.memory_space<vmem>>) attributes {dimension_semantics = [], scalar_prefetch = 0 : i64, scratch_operands = 0 : i64, tpu.core_type = #tpu.core_type<tc>} {
    %c0 = arith.constant 0 : index
    %c0_0 = arith.constant 0 : index
    %0 = vector.load %arg0[%c0, %c0_0] : memref<16x128xf32, #tpu.memory_space<vmem>>, vector<16x128xf32>
    %c0_1 = arith.constant 0 : index
    %c0_2 = arith.constant 0 : index
    %c0_3 = arith.constant 0 : index
    %1 = vector.load %arg5[%c0_1, %c0_2, %c0_3] : memref<8x16x128xf32, #tpu.memory_space<vmem>>, vector<1x16x128xf32>
    %2 = vector.shape_cast %1 : vector<1x16x128xf32> to vector<16x128xf32>
    %3 = vector.shape_cast %0 : vector<16x128xf32> to vector<1x16x128xf32>
    tpu.vector_store %arg5[%c0_1, %c0_2, %c0_3], %3 {strides = array<i32>} : memref<8x16x128xf32, #tpu.memory_space<vmem>>, vector<1x16x128xf32>,
    %c0_i32 = arith.constant 0 : i32
    %4 = arith.sitofp %c0_i32 : i32 to f32
    %cst = arith.constant 0.142857149 : f32
    %5 = arith.mulf %4, %cst : f32
    %c0_4 = arith.constant 0 : index
    %c0_5 = arith.constant 0 : index
    %6 = vector.load %arg3[%c0_4, %c0_5] : memref<128x128xf32, #tpu.memory_space<vmem>>, vector<128x128xf32>
    %cst_6 = arith.constant dense<0.000000e+00> : vector<16x128xf32>
    %7 = tpu.matmul %0, %6, %cst_6 {dimension_numbers = #tpu.dot_dimension_numbers<[1], [0], [0], [1], [0, 0, 1, 1], [], []>} : vector<16x128xf32>, vector<128x128xf32>, vector<16x128xf32> -> vector<16x128xf32>
    %c0_7 = arith.constant 0 : index
    %c0_8 = arith.constant 0 : index
    %8 = vector.load %arg2[%c0_7, %c0_8] : memref<1x128xf32, #tpu.memory_space<vmem>>, vector<1x128xf32>
    %9 = vector.broadcast %5 : f32 to vector<1x128xf32>
    %10 = arith.mulf %9, %8 : vector<1x128xf32>
    %11 = vector.broadcast %10 : vector<1x128xf32> to vector<16x128xf32>
    %12 = arith.addf %7, %11 : vector<16x128xf32>
    %c0_9 = arith.constant 0 : index
    %c0_10 = arith.constant 0 : index
    %13 = vector.load %arg1[%c0_9, %c0_10] : memref<16x16xf32, #tpu.memory_space<vmem>>, vector<16x16xf32>
    %cst_11 = arith.constant dense<0.000000e+00> : vector<16x128xf32>
    %14 = tpu.matmul %13, %12, %cst_11 {dimension_numbers = #tpu.dot_dimension_numbers<[1], [0], [0], [1], [0, 0, 1, 1], [], []>} : vector<16x16xf32>, vector<16x128xf32>, vector<16x128xf32> -> vector<16x128xf32>
    %c0_12 = arith.constant 0 : index
    %c0_13 = arith.constant 0 : index
    %15 = vector.load %arg4[%c0_12, %c0_13] : memref<1x128xf32, #tpu.memory_space<vmem>>, vector<1x128xf32>
    %16 = vector.broadcast %15 : vector<1x128xf32> to vector<16x128xf32>
    %17 = arith.addf %14, %16 : vector<16x128xf32>
    %cst_14 = arith.constant 0.142857149 : f32
    %18 = vector.broadcast %cst_14 : f32 to vector<16x128xf32>
    %19 = arith.mulf %18, %17 : vector<16x128xf32>
    %20 = arith.addf %0, %19 : vector<16x128xf32>
    %c1_i32 = arith.constant 1 : i32
    %21 = arith.addi %c0_i32, %c1_i32 : i32
    %22 = arith.index_cast %21 : i32 to index
    %c0_15 = arith.constant 0 : index
    %c0_16 = arith.constant 0 : index
    %23 = vector.load %arg5[%22, %c0_15, %c0_16] : memref<8x16x128xf32, #tpu.memory_space<vmem>>, vector<1x16x128xf32>
    %24 = vector.shape_cast %23 : vector<1x16x128xf32> to vector<16x128xf32>
    %25 = vector.shape_cast %20 : vector<16x128xf32> to vector<1x16x128xf32>
    tpu.vector_store %arg5[%22, %c0_15, %c0_16], %25 {strides = array<i32>} : memref<8x16x128xf32, #tpu.memory_space<vmem>>, vector<1x16x128xf32>,
    %c1_i32_17 = arith.constant 1 : i32
    %26 = arith.sitofp %c1_i32_17 : i32 to f32
    %cst_18 = arith.constant 0.142857149 : f32
    %27 = arith.mulf %26, %cst_18 : f32
    %c0_19 = arith.constant 0 : index
    %c0_20 = arith.constant 0 : index
    %28 = vector.load %arg3[%c0_19, %c0_20] : memref<128x128xf32, #tpu.memory_space<vmem>>, vector<128x128xf32>
    %cst_21 = arith.constant dense<0.000000e+00> : vector<16x128xf32>
    %29 = tpu.matmul %20, %28, %cst_21 {dimension_numbers = #tpu.dot_dimension_numbers<[1], [0], [0], [1], [0, 0, 1, 1], [], []>} : vector<16x128xf32>, vector<128x128xf32>, vector<16x128xf32> -> vector<16x128xf32>
    %c0_22 = arith.constant 0 : index
    %c0_23 = arith.constant 0 : index
    %30 = vector.load %arg2[%c0_22, %c0_23] : memref<1x128xf32, #tpu.memory_space<vmem>>, vector<1x128xf32>
    %31 = vector.broadcast %27 : f32 to vector<1x128xf32>
    %32 = arith.mulf %31, %30 : vector<1x128xf32>
    %33 = vector.broadcast %32 : vector<1x128xf32> to vector<16x128xf32>
    %34 = arith.addf %29, %33 : vector<16x128xf32>
    %c0_24 = arith.constant 0 : index
    %c0_25 = arith.constant 0 : index
    %35 = vector.load %arg1[%c0_24, %c0_25] : memref<16x16xf32, #tpu.memory_space<vmem>>, vector<16x16xf32>
    %cst_26 = arith.constant dense<0.000000e+00> : vector<16x128xf32>
    %36 = tpu.matmul %35, %34, %cst_26 {dimension_numbers = #tpu.dot_dimension_numbers<[1], [0], [0], [1], [0, 0, 1, 1], [], []>} : vector<16x16xf32>, vector<16x128xf32>, vector<16x128xf32> -> vector<16x128xf32>
    %c0_27 = arith.constant 0 : index
    %c0_28 = arith.constant 0 : index
    %37 = vector.load %arg4[%c0_27, %c0_28] : memref<1x128xf32, #tpu.memory_space<vmem>>, vector<1x128xf32>
    %38 = vector.broadcast %37 : vector<1x128xf32> to vector<16x128xf32>
    %39 = arith.addf %36, %38 : vector<16x128xf32>
    %cst_29 = arith.constant 0.142857149 : f32
    %40 = vector.broadcast %cst_29 : f32 to vector<16x128xf32>
    %41 = arith.mulf %40, %39 : vector<16x128xf32>
    %42 = arith.addf %20, %41 : vector<16x128xf32>
    %c1_i32_30 = arith.constant 1 : i32
    %43 = arith.addi %c1_i32_17, %c1_i32_30 : i32
    %44 = arith.index_cast %43 : i32 to index
    %c0_31 = arith.constant 0 : index
    %c0_32 = arith.constant 0 : index
    %45 = vector.load %arg5[%44, %c0_31, %c0_32] : memref<8x16x128xf32, #tpu.memory_space<vmem>>, vector<1x16x128xf32>
    %46 = vector.shape_cast %45 : vector<1x16x128xf32> to vector<16x128xf32>
    %47 = vector.shape_cast %42 : vector<16x128xf32> to vector<1x16x128xf32>
    tpu.vector_store %arg5[%44, %c0_31, %c0_32], %47 {strides = array<i32>} : memref<8x16x128xf32, #tpu.memory_space<vmem>>, vector<1x16x128xf32>,
    %c2_i32 = arith.constant 2 : i32
    %48 = arith.sitofp %c2_i32 : i32 to f32
    %cst_33 = arith.constant 0.142857149 : f32
    %49 = arith.mulf %48, %cst_33 : f32
    %c0_34 = arith.constant 0 : index
    %c0_35 = arith.constant 0 : index
    %50 = vector.load %arg3[%c0_34, %c0_35] : memref<128x128xf32, #tpu.memory_space<vmem>>, vector<128x128xf32>
    %cst_36 = arith.constant dense<0.000000e+00> : vector<16x128xf32>
    %51 = tpu.matmul %42, %50, %cst_36 {dimension_numbers = #tpu.dot_dimension_numbers<[1], [0], [0], [1], [0, 0, 1, 1], [], []>} : vector<16x128xf32>, vector<128x128xf32>, vector<16x128xf32> -> vector<16x128xf32>
    %c0_37 = arith.constant 0 : index
    %c0_38 = arith.constant 0 : index
    %52 = vector.load %arg2[%c0_37, %c0_38] : memref<1x128xf32, #tpu.memory_space<vmem>>, vector<1x128xf32>
    %53 = vector.broadcast %49 : f32 to vector<1x128xf32>
    %54 = arith.mulf %53, %52 : vector<1x128xf32>
    %55 = vector.broadcast %54 : vector<1x128xf32> to vector<16x128xf32>
    %56 = arith.addf %51, %55 : vector<16x128xf32>
    %c0_39 = arith.constant 0 : index
    %c0_40 = arith.constant 0 : index
    %57 = vector.load %arg1[%c0_39, %c0_40] : memref<16x16xf32, #tpu.memory_space<vmem>>, vector<16x16xf32>
    %cst_41 = arith.constant dense<0.000000e+00> : vector<16x128xf32>
    %58 = tpu.matmul %57, %56, %cst_41 {dimension_numbers = #tpu.dot_dimension_numbers<[1], [0], [0], [1], [0, 0, 1, 1], [], []>} : vector<16x16xf32>, vector<16x128xf32>, vector<16x128xf32> -> vector<16x128xf32>
    %c0_42 = arith.constant 0 : index
    %c0_43 = arith.constant 0 : index
    %59 = vector.load %arg4[%c0_42, %c0_43] : memref<1x128xf32, #tpu.memory_space<vmem>>, vector<1x128xf32>
    %60 = vector.broadcast %59 : vector<1x128xf32> to vector<16x128xf32>
    %61 = arith.addf %58, %60 : vector<16x128xf32>
    %cst_44 = arith.constant 0.142857149 : f32
    %62 = vector.broadcast %cst_44 : f32 to vector<16x128xf32>
    %63 = arith.mulf %62, %61 : vector<16x128xf32>
    %64 = arith.addf %42, %63 : vector<16x128xf32>
    %c1_i32_45 = arith.constant 1 : i32
    %65 = arith.addi %c2_i32, %c1_i32_45 : i32
    %66 = arith.index_cast %65 : i32 to index
    %c0_46 = arith.constant 0 : index
    %c0_47 = arith.constant 0 : index
    %67 = vector.load %arg5[%66, %c0_46, %c0_47] : memref<8x16x128xf32, #tpu.memory_space<vmem>>, vector<1x16x128xf32>
    %68 = vector.shape_cast %67 : vector<1x16x128xf32> to vector<16x128xf32>
    %69 = vector.shape_cast %64 : vector<16x128xf32> to vector<1x16x128xf32>
    tpu.vector_store %arg5[%66, %c0_46, %c0_47], %69 {strides = array<i32>} : memref<8x16x128xf32, #tpu.memory_space<vmem>>, vector<1x16x128xf32>,
    %c3_i32 = arith.constant 3 : i32
    %70 = arith.sitofp %c3_i32 : i32 to f32
    %cst_48 = arith.constant 0.142857149 : f32
    %71 = arith.mulf %70, %cst_48 : f32
    %c0_49 = arith.constant 0 : index
    %c0_50 = arith.constant 0 : index
    %72 = vector.load %arg3[%c0_49, %c0_50] : memref<128x128xf32, #tpu.memory_space<vmem>>, vector<128x128xf32>
    %cst_51 = arith.constant dense<0.000000e+00> : vector<16x128xf32>
    %73 = tpu.matmul %64, %72, %cst_51 {dimension_numbers = #tpu.dot_dimension_numbers<[1], [0], [0], [1], [0, 0, 1, 1], [], []>} : vector<16x128xf32>, vector<128x128xf32>, vector<16x128xf32> -> vector<16x128xf32>
    %c0_52 = arith.constant 0 : index
    %c0_53 = arith.constant 0 : index
    %74 = vector.load %arg2[%c0_52, %c0_53] : memref<1x128xf32, #tpu.memory_space<vmem>>, vector<1x128xf32>
    %75 = vector.broadcast %71 : f32 to vector<1x128xf32>
    %76 = arith.mulf %75, %74 : vector<1x128xf32>
    %77 = vector.broadcast %76 : vector<1x128xf32> to vector<16x128xf32>
    %78 = arith.addf %73, %77 : vector<16x128xf32>
    %c0_54 = arith.constant 0 : index
    %c0_55 = arith.constant 0 : index
    %79 = vector.load %arg1[%c0_54, %c0_55] : memref<16x16xf32, #tpu.memory_space<vmem>>, vector<16x16xf32>
    %cst_56 = arith.constant dense<0.000000e+00> : vector<16x128xf32>
    %80 = tpu.matmul %79, %78, %cst_56 {dimension_numbers = #tpu.dot_dimension_numbers<[1], [0], [0], [1], [0, 0, 1, 1], [], []>} : vector<16x16xf32>, vector<16x128xf32>, vector<16x128xf32> -> vector<16x128xf32>
    %c0_57 = arith.constant 0 : index
    %c0_58 = arith.constant 0 : index
    %81 = vector.load %arg4[%c0_57, %c0_58] : memref<1x128xf32, #tpu.memory_space<vmem>>, vector<1x128xf32>
    %82 = vector.broadcast %81 : vector<1x128xf32> to vector<16x128xf32>
    %83 = arith.addf %80, %82 : vector<16x128xf32>
    %cst_59 = arith.constant 0.142857149 : f32
    %84 = vector.broadcast %cst_59 : f32 to vector<16x128xf32>
    %85 = arith.mulf %84, %83 : vector<16x128xf32>
    %86 = arith.addf %64, %85 : vector<16x128xf32>
    %c1_i32_60 = arith.constant 1 : i32
    %87 = arith.addi %c3_i32, %c1_i32_60 : i32
    %88 = arith.index_cast %87 : i32 to index
    %c0_61 = arith.constant 0 : index
    %c0_62 = arith.constant 0 : index
    %89 = vector.load %arg5[%88, %c0_61, %c0_62] : memref<8x16x128xf32, #tpu.memory_space<vmem>>, vector<1x16x128xf32>
    %90 = vector.shape_cast %89 : vector<1x16x128xf32> to vector<16x128xf32>
    %91 = vector.shape_cast %86 : vector<16x128xf32> to vector<1x16x128xf32>
    tpu.vector_store %arg5[%88, %c0_61, %c0_62], %91 {strides = array<i32>} : memref<8x16x128xf32, #tpu.memory_space<vmem>>, vector<1x16x128xf32>,
    %c4_i32 = arith.constant 4 : i32
    %92 = arith.sitofp %c4_i32 : i32 to f32
    %cst_63 = arith.constant 0.142857149 : f32
    %93 = arith.mulf %92, %cst_63 : f32
    %c0_64 = arith.constant 0 : index
    %c0_65 = arith.constant 0 : index
    %94 = vector.load %arg3[%c0_64, %c0_65] : memref<128x128xf32, #tpu.memory_space<vmem>>, vector<128x128xf32>
    %cst_66 = arith.constant dense<0.000000e+00> : vector<16x128xf32>
    %95 = tpu.matmul %86, %94, %cst_66 {dimension_numbers = #tpu.dot_dimension_numbers<[1], [0], [0], [1], [0, 0, 1, 1], [], []>} : vector<16x128xf32>, vector<128x128xf32>, vector<16x128xf32> -> vector<16x128xf32>
    %c0_67 = arith.constant 0 : index
    %c0_68 = arith.constant 0 : index
    %96 = vector.load %arg2[%c0_67, %c0_68] : memref<1x128xf32, #tpu.memory_space<vmem>>, vector<1x128xf32>
    %97 = vector.broadcast %93 : f32 to vector<1x128xf32>
    %98 = arith.mulf %97, %96 : vector<1x128xf32>
    %99 = vector.broadcast %98 : vector<1x128xf32> to vector<16x128xf32>
    %100 = arith.addf %95, %99 : vector<16x128xf32>
    %c0_69 = arith.constant 0 : index
    %c0_70 = arith.constant 0 : index
    %101 = vector.load %arg1[%c0_69, %c0_70] : memref<16x16xf32, #tpu.memory_space<vmem>>, vector<16x16xf32>
    %cst_71 = arith.constant dense<0.000000e+00> : vector<16x128xf32>
    %102 = tpu.matmul %101, %100, %cst_71 {dimension_numbers = #tpu.dot_dimension_numbers<[1], [0], [0], [1], [0, 0, 1, 1], [], []>} : vector<16x16xf32>, vector<16x128xf32>, vector<16x128xf32> -> vector<16x128xf32>
    %c0_72 = arith.constant 0 : index
    %c0_73 = arith.constant 0 : index
    %103 = vector.load %arg4[%c0_72, %c0_73] : memref<1x128xf32, #tpu.memory_space<vmem>>, vector<1x128xf32>
    %104 = vector.broadcast %103 : vector<1x128xf32> to vector<16x128xf32>
    %105 = arith.addf %102, %104 : vector<16x128xf32>
    %cst_74 = arith.constant 0.142857149 : f32
    %106 = vector.broadcast %cst_74 : f32 to vector<16x128xf32>
    %107 = arith.mulf %106, %105 : vector<16x128xf32>
    %108 = arith.addf %86, %107 : vector<16x128xf32>
    %c1_i32_75 = arith.constant 1 : i32
    %109 = arith.addi %c4_i32, %c1_i32_75 : i32
    %110 = arith.index_cast %109 : i32 to index
    %c0_76 = arith.constant 0 : index
    %c0_77 = arith.constant 0 : index
    %111 = vector.load %arg5[%110, %c0_76, %c0_77] : memref<8x16x128xf32, #tpu.memory_space<vmem>>, vector<1x16x128xf32>
    %112 = vector.shape_cast %111 : vector<1x16x128xf32> to vector<16x128xf32>
    %113 = vector.shape_cast %108 : vector<16x128xf32> to vector<1x16x128xf32>
    tpu.vector_store %arg5[%110, %c0_76, %c0_77], %113 {strides = array<i32>} : memref<8x16x128xf32, #tpu.memory_space<vmem>>, vector<1x16x128xf32>,
    %c5_i32 = arith.constant 5 : i32
    %114 = arith.sitofp %c5_i32 : i32 to f32
    %cst_78 = arith.constant 0.142857149 : f32
    %115 = arith.mulf %114, %cst_78 : f32
    %c0_79 = arith.constant 0 : index
    %c0_80 = arith.constant 0 : index
    %116 = vector.load %arg3[%c0_79, %c0_80] : memref<128x128xf32, #tpu.memory_space<vmem>>, vector<128x128xf32>
    %cst_81 = arith.constant dense<0.000000e+00> : vector<16x128xf32>
    %117 = tpu.matmul %108, %116, %cst_81 {dimension_numbers = #tpu.dot_dimension_numbers<[1], [0], [0], [1], [0, 0, 1, 1], [], []>} : vector<16x128xf32>, vector<128x128xf32>, vector<16x128xf32> -> vector<16x128xf32>
    %c0_82 = arith.constant 0 : index
    %c0_83 = arith.constant 0 : index
    %118 = vector.load %arg2[%c0_82, %c0_83] : memref<1x128xf32, #tpu.memory_space<vmem>>, vector<1x128xf32>
    %119 = vector.broadcast %115 : f32 to vector<1x128xf32>
    %120 = arith.mulf %119, %118 : vector<1x128xf32>
    %121 = vector.broadcast %120 : vector<1x128xf32> to vector<16x128xf32>
    %122 = arith.addf %117, %121 : vector<16x128xf32>
    %c0_84 = arith.constant 0 : index
    %c0_85 = arith.constant 0 : index
    %123 = vector.load %arg1[%c0_84, %c0_85] : memref<16x16xf32, #tpu.memory_space<vmem>>, vector<16x16xf32>
    %cst_86 = arith.constant dense<0.000000e+00> : vector<16x128xf32>
    %124 = tpu.matmul %123, %122, %cst_86 {dimension_numbers = #tpu.dot_dimension_numbers<[1], [0], [0], [1], [0, 0, 1, 1], [], []>} : vector<16x16xf32>, vector<16x128xf32>, vector<16x128xf32> -> vector<16x128xf32>
    %c0_87 = arith.constant 0 : index
    %c0_88 = arith.constant 0 : index
    %125 = vector.load %arg4[%c0_87, %c0_88] : memref<1x128xf32, #tpu.memory_space<vmem>>, vector<1x128xf32>
    %126 = vector.broadcast %125 : vector<1x128xf32> to vector<16x128xf32>
    %127 = arith.addf %124, %126 : vector<16x128xf32>
    %cst_89 = arith.constant 0.142857149 : f32
    %128 = vector.broadcast %cst_89 : f32 to vector<16x128xf32>
    %129 = arith.mulf %128, %127 : vector<16x128xf32>
    %130 = arith.addf %108, %129 : vector<16x128xf32>
    %c1_i32_90 = arith.constant 1 : i32
    %131 = arith.addi %c5_i32, %c1_i32_90 : i32
    %132 = arith.index_cast %131 : i32 to index
    %c0_91 = arith.constant 0 : index
    %c0_92 = arith.constant 0 : index
    %133 = vector.load %arg5[%132, %c0_91, %c0_92] : memref<8x16x128xf32, #tpu.memory_space<vmem>>, vector<1x16x128xf32>
    %134 = vector.shape_cast %133 : vector<1x16x128xf32> to vector<16x128xf32>
    %135 = vector.shape_cast %130 : vector<16x128xf32> to vector<1x16x128xf32>
    tpu.vector_store %arg5[%132, %c0_91, %c0_92], %135 {strides = array<i32>} : memref<8x16x128xf32, #tpu.memory_space<vmem>>, vector<1x16x128xf32>,
    %c6_i32 = arith.constant 6 : i32
    %136 = arith.sitofp %c6_i32 : i32 to f32
    %cst_93 = arith.constant 0.142857149 : f32
    %137 = arith.mulf %136, %cst_93 : f32
    %c0_94 = arith.constant 0 : index
    %c0_95 = arith.constant 0 : index
    %138 = vector.load %arg3[%c0_94, %c0_95] : memref<128x128xf32, #tpu.memory_space<vmem>>, vector<128x128xf32>
    %cst_96 = arith.constant dense<0.000000e+00> : vector<16x128xf32>
    %139 = tpu.matmul %130, %138, %cst_96 {dimension_numbers = #tpu.dot_dimension_numbers<[1], [0], [0], [1], [0, 0, 1, 1], [], []>} : vector<16x128xf32>, vector<128x128xf32>, vector<16x128xf32> -> vector<16x128xf32>
    %c0_97 = arith.constant 0 : index
    %c0_98 = arith.constant 0 : index
    %140 = vector.load %arg2[%c0_97, %c0_98] : memref<1x128xf32, #tpu.memory_space<vmem>>, vector<1x128xf32>
    %141 = vector.broadcast %137 : f32 to vector<1x128xf32>
    %142 = arith.mulf %141, %140 : vector<1x128xf32>
    %143 = vector.broadcast %142 : vector<1x128xf32> to vector<16x128xf32>
    %144 = arith.addf %139, %143 : vector<16x128xf32>
    %c0_99 = arith.constant 0 : index
    %c0_100 = arith.constant 0 : index
    %145 = vector.load %arg1[%c0_99, %c0_100] : memref<16x16xf32, #tpu.memory_space<vmem>>, vector<16x16xf32>
    %cst_101 = arith.constant dense<0.000000e+00> : vector<16x128xf32>
    %146 = tpu.matmul %145, %144, %cst_101 {dimension_numbers = #tpu.dot_dimension_numbers<[1], [0], [0], [1], [0, 0, 1, 1], [], []>} : vector<16x16xf32>, vector<16x128xf32>, vector<16x128xf32> -> vector<16x128xf32>
    %c0_102 = arith.constant 0 : index
    %c0_103 = arith.constant 0 : index
    %147 = vector.load %arg4[%c0_102, %c0_103] : memref<1x128xf32, #tpu.memory_space<vmem>>, vector<1x128xf32>
    %148 = vector.broadcast %147 : vector<1x128xf32> to vector<16x128xf32>
    %149 = arith.addf %146, %148 : vector<16x128xf32>
    %cst_104 = arith.constant 0.142857149 : f32
    %150 = vector.broadcast %cst_104 : f32 to vector<16x128xf32>
    %151 = arith.mulf %150, %149 : vector<16x128xf32>
    %152 = arith.addf %130, %151 : vector<16x128xf32>
    %c1_i32_105 = arith.constant 1 : i32
    %153 = arith.addi %c6_i32, %c1_i32_105 : i32
    %154 = arith.index_cast %153 : i32 to index
    %c0_106 = arith.constant 0 : index
    %c0_107 = arith.constant 0 : index
    %155 = vector.load %arg5[%154, %c0_106, %c0_107] : memref<8x16x128xf32, #tpu.memory_space<vmem>>, vector<1x16x128xf32>
    %156 = vector.shape_cast %155 : vector<1x16x128xf32> to vector<16x128xf32>
    %157 = vector.shape_cast %152 : vector<16x128xf32> to vector<1x16x128xf32>
    tpu.vector_store %arg5[%154, %c0_106, %c0_107], %157 {strides = array<i32>} : memref<8x16x128xf32, #tpu.memory_space<vmem>>, vector<1x16x128xf32>,
    %c7_i32 = arith.constant 7 : i32
    return
  }
}

</mosaic_0001>

<llo_original>
// kernel: tpu_custom_call.1
$region0: #{tpu_custom_call.1}
  #allocation0 [shape = 'u32[]', space=smem, size = 0x4, offset = 0x4, fixed_abs, tag = 'smem constant byte address 0x4 - core index']
  #allocation1 [shape = 'u32[144,128]{1,0:T(1,128)}', space=vmem, size = 0x12000, scoped, tag = 'internal scratch']
  %s0 = inlined_call_operand.hbm [shape: f32[16,128], index: 0, kind: input, shape index: {}]
  %s1 = inlined_call_operand.hbm [shape: f32[16,16], index: 1, kind: input, shape index: {}]
  %s2 = inlined_call_operand.vmem [shape: f32[1,128], index: 2, kind: input, shape index: {}]
  %s3 = inlined_call_operand.hbm [shape: f32[128,128], index: 3, kind: input, shape index: {}]
  %s4 = inlined_call_operand.vmem [shape: f32[1,128], index: 4, kind: input, shape index: {}]
  %s5 = inlined_call_operand.hbm [shape: f32[8,16,128], index: 5, kind: output, shape index: {}]
  %s6 = sld [smem:[#allocation0]]
  $region42: #{tpu_custom_call.1} parent=0
    _
  %s8 = ssub.s32 1, %s6
  %s9 = scalar_select 0, %s8, %s6
  $region1: #{tpu_custom_call.1} parent=0
    #allocation2 [shape = 'u8[8192]{0}', space=vmem, size = 0x2000, scoped, tag = 'input window, operand 0, single buffered']
    #allocation3 [shape = 's32[1]{0}', space=sflag, size = 0x4, scoped, tag = 'scoped memory for tpu_custom_call.1']
    #allocation4 [shape = 's32[1]{0}', space=sflag, size = 0x4, scoped, tag = 'scoped memory for tpu_custom_call.1']
    #allocation5 [shape = 'u8[8192]{0}', space=vmem, size = 0x2000, scoped, tag = 'input window, operand 1, single buffered']
    #allocation6 [shape = 's32[1]{0}', space=sflag, size = 0x4, scoped, tag = 'scoped memory for tpu_custom_call.1']
    #allocation7 [shape = 'u8[65536]{0}', space=vmem, size = 0x10000, scoped, tag = 'input window, operand 3, single buffered']
    #allocation8 [shape = 'u8[65536]{0}', space=vmem, size = 0x10000, scoped, tag = 'output window, operand 0, single buffered']
    %10 = vsyncpa [#allocation3], 0
    %11 = vsyncpa [#allocation6], 0
    %12 = vsyncpa [#allocation4], 0
    // Predicated region
    $region2: #{tpu_custom_call.1} parent=1 // pred_check
      _
    $region3: #{tpu_custom_call.1} parent=1 // pred_check_branch
      %14 = sbr.rel (0) target = $region5
    $region4: #{tpu_custom_call.1} parent=1 // pred_region
      %s16 = ssub.s32 256, 256
      %17 = vsyncadd [#allocation3], %s16
      %s18 = sshll.u32 [#allocation2], 4
      %s19 = int_to_ptr.vmem [resolvable:$true] %s18
      %24 = dma.hbm_to_vmem [thread:$0]  %s0, 256, %s19, [#allocation3], 128, 128, 8
    $region5: #{tpu_custom_call.1} parent=1 // pred_fallthru
      _
    // Predicated region
    $region6: #{tpu_custom_call.1} parent=1 // pred_check
      _
    $region7: #{tpu_custom_call.1} parent=1 // pred_check_branch
      %26 = sbr.rel (0) target = $region9
    $region8: #{tpu_custom_call.1} parent=1 // pred_region
      %s28 = ssub.s32 256, 256
      %29 = vsyncadd [#allocation6], %s28
      %s30 = sshll.u32 [#allocation5], 4
      %s31 = int_to_ptr.vmem [resolvable:$true] %s30
      %36 = dma.hbm_to_vmem [thread:$0]  %s1, 256, %s31, [#allocation6], 128, 128, 8
    $region9: #{tpu_custom_call.1} parent=1 // pred_fallthru
      _
    // Predicated region
    $region10: #{tpu_custom_call.1} parent=1 // pred_check
      _
    $region11: #{tpu_custom_call.1} parent=1 // pred_check_branch
      %38 = sbr.rel (0) target = $region13
    $region12: #{tpu_custom_call.1} parent=1 // pred_region
      _
    $region13: #{tpu_custom_call.1} parent=1 // pred_fallthru
      _
    // Predicated region
    $region14: #{tpu_custom_call.1} parent=1 // pred_check
      _
    $region15: #{tpu_custom_call.1} parent=1 // pred_check_branch
      %40 = sbr.rel (0) target = $region17
    $region16: #{tpu_custom_call.1} parent=1 // pred_region
      %s42 = ssub.s32 2048, 2048
      %43 = vsyncadd [#allocation6], %s42
      %s44 = sshll.u32 [#allocation7], 4
      %s45 = int_to_ptr.vmem [resolvable:$true] %s44
      %50 = dma.hbm_to_vmem [thread:$0]  %s3, 2048, %s45, [#allocation6], 128, 128, 8
    $region17: #{tpu_custom_call.1} parent=1 // pred_fallthru
      _
    // Predicated region
    $region18: #{tpu_custom_call.1} parent=1 // pred_check
      _
    $region19: #{tpu_custom_call.1} parent=1 // pred_check_branch
      %52 = sbr.rel (0) target = $region21
    $region20: #{tpu_custom_call.1} parent=1 // pred_region
      _
    $region21: #{tpu_custom_call.1} parent=1 // pred_fallthru
      _
    // Predicated region
    $region22: #{tpu_custom_call.1} parent=1 // pred_check
      _
    $region23: #{tpu_custom_call.1} parent=1 // pred_check_branch
      %54 = sbr.rel (0) target = $region25
    $region24: #{tpu_custom_call.1} parent=1 // pred_region
      %55 = dma.done [#allocation3], 256
    $region25: #{tpu_custom_call.1} parent=1 // pred_fallthru
      _
    // Predicated region
    $region26: #{tpu_custom_call.1} parent=1 // pred_check
      _
    $region27: #{tpu_custom_call.1} parent=1 // pred_check_branch
      %57 = sbr.rel (0) target = $region29
    $region28: #{tpu_custom_call.1} parent=1 // pred_region
      %58 = dma.done [#allocation6], 256
    $region29: #{tpu_custom_call.1} parent=1 // pred_fallthru
      _
    // Predicated region
    $region30: #{tpu_custom_call.1} parent=1 // pred_check
      _
    $region31: #{tpu_custom_call.1} parent=1 // pred_check_branch
      %60 = sbr.rel (0) target = $region33
    $region32: #{tpu_custom_call.1} parent=1 // pred_region
      %61 = dma.done [#allocation6], 2048
    $region33: #{tpu_custom_call.1} parent=1 // pred_fallthru
      _
    %v62 = vld [vmem:[#allocation2] sm:$0xff]
    %v63 = vld [vmem:[#allocation2 + $0x8] sm:$0xff]
    %64 = vst [vmem:[#allocation8] sm:$0xff] %v62
    %65 = vst [vmem:[#allocation8 + $0x8] sm:$0xff] %v63
    %v66 = vld [vmem:[#allocation7] sm:$0xff]
    %v67 = vld [vmem:[#allocation7 + $0x8] sm:$0xff]
    %v68 = vld [vmem:[#allocation7 + $0x10] sm:$0xff]
    %v69 = vld [vmem:[#allocation7 + $0x18] sm:$0xff]
    %v70 = vld [vmem:[#allocation7 + $0x20] sm:$0xff]
    %v71 = vld [vmem:[#allocation7 + $0x28] sm:$0xff]
    %v72 = vld [vmem:[#allocation7 + $0x30] sm:$0xff]
    %v73 = vld [vmem:[#allocation7 + $0x38] sm:$0xff]
    %v74 = vld [vmem:[#allocation7 + $0x40] sm:$0xff]
    %v75 = vld [vmem:[#allocation7 + $0x48] sm:$0xff]
    %v76 = vld [vmem:[#allocation7 + $0x50] sm:$0xff]
    %v77 = vld [vmem:[#allocation7 + $0x58] sm:$0xff]
    %v78 = vld [vmem:[#allocation7 + $0x60] sm:$0xff]
    %v79 = vld [vmem:[#allocation7 + $0x68] sm:$0xff]
    %v80 = vld [vmem:[#allocation7 + $0x70] sm:$0xff]
    %v81 = vld [vmem:[#allocation7 + $0x78] sm:$0xff]
    %v82 = vld [vmem:[%s2] sm:$0x1]
    %v83 = vmul.f32 %v82, 0.0
    %v85 = vlaneseq
    %v86 = vshrl.u32 %v85, 7
    %v87 = vsub.s32 0, %v86
    %v88 = vrot.slane %v83, %v87
    %90 = vmatprep.subr.mxu0 0.0
    %91 = vmatpush1.msra.mxu0 %v66
    %92 = vmatprep.subr.mxu0 0.0
    %93 = vmatpush1.msra.mxu0 %v67
    %94 = vmatprep.subr.mxu0 0.0
    %95 = vmatpush1.msra.mxu0 %v68
    %96 = vmatprep.subr.mxu0 0.0
    %97 = vmatpush1.msra.mxu0 %v69
    %98 = vmatprep.subr.mxu0 0.0
    %99 = vmatpush1.msra.mxu0 %v70
    %100 = vmatprep.subr.mxu0 0.0
    %101 = vmatpush1.msra.mxu0 %v71
    %102 = vmatprep.subr.mxu0 0.0
    %103 = vmatpush1.msra.mxu0 %v72
    %104 = vmatprep.subr.mxu0 0.0
    %105 = vmatpush1.msra.mxu0 %v73
    %106 = vmatprep.subr.mxu0 0.0
    %107 = vmatpush1.msra.mxu0 %v74
    %108 = vmatprep.subr.mxu0 0.0
    %109 = vmatpush1.msra.mxu0 %v75
    %110 = vmatprep.subr.mxu0 0.0
    %111 = vmatpush1.msra.mxu0 %v76
    %112 = vmatprep.subr.mxu0 0.0
    %113 = vmatpush1.msra.mxu0 %v77
    %114 = vmatprep.subr.mxu0 0.0
    %115 = vmatpush1.msra.mxu0 %v78
    %116 = vmatprep.subr.mxu0 0.0
    %117 = vmatpush1.msra.mxu0 %v79
    %118 = vmatprep.subr.mxu0 0.0
    %119 = vmatpush1.msra.mxu0 %v80
    %120 = vmatprep.subr.mxu0 0.0
    %121 = vmatpush1.msra.mxu0 %v81
    %122 = vmatprep.subr.mxu0 0.0
    %123 = vmatpush1.msra.mxu0 0.0
    %124 = vmatprep.subr.mxu0 0.0
    %125 = vmatpush1.msra.mxu0 0.0
    %126 = vmatprep.subr.mxu0 0.0
    %127 = vmatpush1.msra.mxu0 0.0
    %128 = vmatprep.subr.mxu0 0.0
    %129 = vmatpush1.msra.mxu0 0.0
    %130 = vmatprep.subr.mxu0 0.0
    %131 = vmatpush1.msra.mxu0 0.0
    %132 = vmatprep.subr.mxu0 0.0
    %133 = vmatpush1.msra.mxu0 0.0
    %134 = vmatprep.subr.mxu0 0.0
    %135 = vmatpush1.msra.mxu0 0.0
    %136 = vmatprep.subr.mxu0 0.0
    %137 = vmatpush1.msra.mxu0 0.0
    %138 = vmatprep.subr.mxu0 0.0
    %139 = vmatpush1.msra.mxu0 0.0
    %140 = vmatprep.subr.mxu0 0.0
    %141 = vmatpush1.msra.mxu0 0.0
    %142 = vmatprep.subr.mxu0 0.0
    %143 = vmatpush1.msra.mxu0 0.0
    %144 = vmatprep.subr.mxu0 0.0
    %145 = vmatpush1.msra.mxu0 0.0
    %146 = vmatprep.subr.mxu0 0.0
    %147 = vmatpush1.msra.mxu0 0.0
    %148 = vmatprep.subr.mxu0 0.0
    %149 = vmatpush1.msra.mxu0 0.0
    %150 = vmatprep.subr.mxu0 0.0
    %151 = vmatpush1.msra.mxu0 0.0
    %152 = vmatprep.subr.mxu0 0.0
    %153 = vmatpush1.msra.mxu0 0.0
    %154 = vmatprep.mubr.f32.mxu0 0.0
    %155 = vmatmul.mubr.f32.gmra.mrb[0].mxu0 %v62
    %v156 = vpop.f32.mrb[0].mxu0
    %v157 = vadd.f32 %v88, %v156
    %v158 = vpop.f32.mrb[0].mxu0
    %159 = vmatprep.mubr.f32.mxu0 0.0
    %160 = vmatmul.mubr.f32.gmra.mrb[0].mxu0 %v63
    %v161 = vpop.f32.mrb[0].mxu0
    %v162 = vadd.f32 %v88, %v161
    %v163 = vpop.f32.mrb[0].mxu0
    %164 = vdwg.mxu0
    %v165 = vld [vmem:[#allocation5] sm:$0xff]
    %v166 = vld [vmem:[#allocation5 + $0x8] sm:$0xff]
    %v167 = vld [vmem:[%s4] sm:$0x1]
    %v169 = vlaneseq
    %v170 = vshrl.u32 %v169, 7
    %v171 = vsub.s32 0, %v170
    %v172 = vrot.slane %v167, %v171
    %vm174 = vcmask 130048
    %v176 = vsel %vm174, %v165, 0
    %v179 = vsel %vm174, %v166, 0
    %181 = vmatprep.subr.mxu0 0.0
    %182 = vmatpush1.msra.mxu0 %v157
    %183 = vmatprep.subr.mxu0 0.0
    %184 = vmatpush1.msra.mxu0 %v162
    %185 = vmatprep.subr.mxu0 0.0
    %186 = vmatpush1.msra.mxu0 0.0
    %187 = vmatprep.subr.mxu0 0.0
    %188 = vmatpush1.msra.mxu0 0.0
    %189 = vmatprep.subr.mxu0 0.0
    %190 = vmatpush1.msra.mxu0 0.0
    %191 = vmatprep.subr.mxu0 0.0
    %192 = vmatpush1.msra.mxu0 0.0
    %193 = vmatprep.subr.mxu0 0.0
    %194 = vmatpush1.msra.mxu0 0.0
    %195 = vmatprep.subr.mxu0 0.0
    %196 = vmatpush1.msra.mxu0 0.0
    %197 = vmatprep.subr.mxu0 0.0
    %198 = vmatpush1.msra.mxu0 0.0
    %199 = vmatprep.subr.mxu0 0.0
    %200 = vmatpush1.msra.mxu0 0.0
    %201 = vmatprep.subr.mxu0 0.0
    %202 = vmatpush1.msra.mxu0 0.0
    %203 = vmatprep.subr.mxu0 0.0
    %204 = vmatpush1.msra.mxu0 0.0
    %205 = vmatprep.subr.mxu0 0.0
    %206 = vmatpush1.msra.mxu0 0.0
    %207 = vmatprep.subr.mxu0 0.0
    %208 = vmatpush1.msra.mxu0 0.0
    %209 = vmatprep.subr.mxu0 0.0
    %210 = vmatpush1.msra.mxu0 0.0
    %211 = vmatprep.subr.mxu0 0.0
    %212 = vmatpush1.msra.mxu0 0.0
    %213 = vmatprep.subr.mxu0 0.0
    %214 = vmatpush1.msra.mxu0 0.0
    %215 = vmatprep.subr.mxu0 0.0
    %216 = vmatpush1.msra.mxu0 0.0
    %217 = vmatprep.subr.mxu0 0.0
    %218 = vmatpush1.msra.mxu0 0.0
    %219 = vmatprep.subr.mxu0 0.0
    %220 = vmatpush1.msra.mxu0 0.0
    %221 = vmatprep.subr.mxu0 0.0
    %222 = vmatpush1.msra.mxu0 0.0
    %223 = vmatprep.subr.mxu0 0.0
    %224 = vmatpush1.msra.mxu0 0.0
    %225 = vmatprep.subr.mxu0 0.0
    %226 = vmatpush1.msra.mxu0 0.0
    %227 = vmatprep.subr.mxu0 0.0
    %228 = vmatpush1.msra.mxu0 0.0
    %229 = vmatprep.subr.mxu0 0.0
    %230 = vmatpush1.msra.mxu0 0.0
    %231 = vmatprep.subr.mxu0 0.0
    %232 = vmatpush1.msra.mxu0 0.0
    %233 = vmatprep.subr.mxu0 0.0
    %234 = vmatpush1.msra.mxu0 0.0
    %235 = vmatprep.subr.mxu0 0.0
    %236 = vmatpush1.msra.mxu0 0.0
    %237 = vmatprep.subr.mxu0 0.0
    %238 = vmatpush1.msra.mxu0 0.0
    %239 = vmatprep.subr.mxu0 0.0
    %240 = vmatpush1.msra.mxu0 0.0
    %241 = vmatprep.subr.mxu0 0.0
    %242 = vmatpush1.msra.mxu0 0.0
    %243 = vmatprep.subr.mxu0 0.0
    %244 = vmatpush1.msra.mxu0 0.0
    %245 = vmatprep.mubr.f32.mxu0 0.0
    %246 = vmatmul.mubr.f32.gmra.mrb[0].mxu0 %v176
    %v247 = vpop.f32.mrb[0].mxu0
    %v248 = vadd.f32 %v172, %v247
    %v249 = vpop.f32.mrb[0].mxu0
    %250 = vmatprep.mubr.f32.mxu0 0.0
    %251 = vmatmul.mubr.f32.gmra.mrb[0].mxu0 %v179
    %v252 = vpop.f32.mrb[0].mxu0
    %v253 = vadd.f32 %v172, %v252
    %v254 = vpop.f32.mrb[0].mxu0
    %255 = vdwg.mxu0
    %v256 = vmul.f32 %v248, 0.14285715
    %v257 = vmul.f32 %v253, 0.14285715
    %v258 = vadd.f32 %v62, %v256
    %v259 = vadd.f32 %v63, %v257
    %s260 = scalar_lea.vmem [#allocation8], 16
    %261 = vst [vmem:[%s260] sm:$0xff] %v258
    %262 = vst [vmem:[%s260 + $0x8] sm:$0xff] %v259
    %v263 = vld [vmem:[#allocation7] sm:$0xff]
    %v264 = vld [vmem:[#allocation7 + $0x8] sm:$0xff]
    %v265 = vld [vmem:[#allocation7 + $0x10] sm:$0xff]
    %v266 = vld [vmem:[#allocation7 + $0x18] sm:$0xff]
    %v267 = vld [vmem:[#allocation7 + $0x20] sm:$0xff]
    %v268 = vld [vmem:[#allocation7 + $0x28] sm:$0xff]
    %v269 = vld [vmem:[#allocation7 + $0x30] sm:$0xff]
    %v270 = vld [vmem:[#allocation7 + $0x38] sm:$0xff]
    %v271 = vld [vmem:[#allocation7 + $0x40] sm:$0xff]
    %v272 = vld [vmem:[#allocation7 + $0x48] sm:$0xff]
    %v273 = vld [vmem:[#allocation7 + $0x50] sm:$0xff]
    %v274 = vld [vmem:[#allocation7 + $0x58] sm:$0xff]
    %v275 = vld [vmem:[#allocation7 + $0x60] sm:$0xff]
    %v276 = vld [vmem:[#allocation7 + $0x68] sm:$0xff]
    %v277 = vld [vmem:[#allocation7 + $0x70] sm:$0xff]
    %v278 = vld [vmem:[#allocation7 + $0x78] sm:$0xff]
    %v279 = vld [vmem:[%s2] sm:$0x1]
    %v280 = vmul.f32 %v279, 0.14285715
    %v282 = vlaneseq
    %v283 = vshrl.u32 %v282, 7
    %v284 = vsub.s32 0, %v283
    %v285 = vrot.slane %v280, %v284
    %287 = vmatprep.subr.mxu0 0.0
    %288 = vmatpush1.msra.mxu0 %v263
    %289 = vmatprep.subr.mxu0 0.0
    %290 = vmatpush1.msra.mxu0 %v264
    %291 = vmatprep.subr.mxu0 0.0
    %292 = vmatpush1.msra.mxu0 %v265
    %293 = vmatprep.subr.mxu0 0.0
    %294 = vmatpush1.msra.mxu0 %v266
    %295 = vmatprep.subr.mxu0 0.0
    %296 = vmatpush1.msra.mxu0 %v267
    %297 = vmatprep.subr.mxu0 0.0
    %298 = vmatpush1.msra.mxu0 %v268
    %299 = vmatprep.subr.mxu0 0.0
    %300 = vmatpush1.msra.mxu0 %v269
    %301 = vmatprep.subr.mxu0 0.0
    %302 = vmatpush1.msra.mxu0 %v270
    %303 = vmatprep.subr.mxu0 0.0
    %304 = vmatpush1.msra.mxu0 %v271
    %305 = vmatprep.subr.mxu0 0.0
    %306 = vmatpush1.msra.mxu0 %v272
    %307 = vmatprep.subr.mxu0 0.0
    %308 = vmatpush1.msra.mxu0 %v273
    %309 = vmatprep.subr.mxu0 0.0
    %310 = vmatpush1.msra.mxu0 %v274
    %311 = vmatprep.subr.mxu0 0.0
    %312 = vmatpush1.msra.mxu0 %v275
    %313 = vmatprep.subr.mxu0 0.0
    %314 = vmatpush1.msra.mxu0 %v276
    %315 = vmatprep.subr.mxu0 0.0
    %316 = vmatpush1.msra.mxu0 %v277
    %317 = vmatprep.subr.mxu0 0.0
    %318 = vmatpush1.msra.mxu0 %v278
    %319 = vmatprep.subr.mxu0 0.0
    %320 = vmatpush1.msra.mxu0 0.0
    %321 = vmatprep.subr.mxu0 0.0
    %322 = vmatpush1.msra.mxu0 0.0
    %323 = vmatprep.subr.mxu0 0.0
    %324 = vmatpush1.msra.mxu0 0.0
    %325 = vmatprep.subr.mxu0 0.0
    %326 = vmatpush1.msra.mxu0 0.0
    %327 = vmatprep.subr.mxu0 0.0
    %328 = vmatpush1.msra.mxu0 0.0
    %329 = vmatprep.subr.mxu0 0.0
    %330 = vmatpush1.msra.mxu0 0.0
    %331 = vmatprep.subr.mxu0 0.0
    %332 = vmatpush1.msra.mxu0 0.0
    %333 = vmatprep.subr.mxu0 0.0
    %334 = vmatpush1.msra.mxu0 0.0
    %335 = vmatprep.subr.mxu0 0.0
    %336 = vmatpush1.msra.mxu0 0.0
    %337 = vmatprep.subr.mxu0 0.0
    %338 = vmatpush1.msra.mxu0 0.0
    %339 = vmatprep.subr.mxu0 0.0
    %340 = vmatpush1.msra.mxu0 0.0
    %341 = vmatprep.subr.mxu0 0.0
    %342 = vmatpush1.msra.mxu0 0.0
    %343 = vmatprep.subr.mxu0 0.0
    %344 = vmatpush1.msra.mxu0 0.0
    %345 = vmatprep.subr.mxu0 0.0
    %346 = vmatpush1.msra.mxu0 0.0
    %347 = vmatprep.subr.mxu0 0.0
    %348 = vmatpush1.msra.mxu0 0.0
    %349 = vmatprep.subr.mxu0 0.0
    %350 = vmatpush1.msra.mxu0 0.0
    %351 = vmatprep.mubr.f32.mxu0 0.0
    %352 = vmatmul.mubr.f32.gmra.mrb[0].mxu0 %v258
    %v353 = vpop.f32.mrb[0].mxu0
    %v354 = vadd.f32 %v285, %v353
    %v355 = vpop.f32.mrb[0].mxu0
    %356 = vmatprep.mubr.f32.mxu0 0.0
    %357 = vmatmul.mubr.f32.gmra.mrb[0].mxu0 %v259
    %v358 = vpop.f32.mrb[0].mxu0
    %v359 = vadd.f32 %v285, %v358
    %v360 = vpop.f32.mrb[0].mxu0
    %361 = vdwg.mxu0
    %v362 = vld [vmem:[#allocation5] sm:$0xff]
    %v363 = vld [vmem:[#allocation5 + $0x8] sm:$0xff]
    %v364 = vld [vmem:[%s4] sm:$0x1]
    %v366 = vlaneseq
    %v367 = vshrl.u32 %v366, 7
    %v368 = vsub.s32 0, %v367
    %v369 = vrot.slane %v364, %v368
    %v372 = vsel %vm174, %v362, 0
    %v375 = vsel %vm174, %v363, 0
    %377 = vmatprep.subr.mxu0 0.0
    %378 = vmatpush1.msra.mxu0 %v354
    %379 = vmatprep.subr.mxu0 0.0
    %380 = vmatpush1.msra.mxu0 %v359
    %381 = vmatprep.subr.mxu0 0.0
    %382 = vmatpush1.msra.mxu0 0.0
    %383 = vmatprep.subr.mxu0 0.0
    %384 = vmatpush1.msra.mxu0 0.0
    %385 = vmatprep.subr.mxu0 0.0
    %386 = vmatpush1.msra.mxu0 0.0
    %387 = vmatprep.subr.mxu0 0.0
    %388 = vmatpush1.msra.mxu0 0.0
    %389 = vmatprep.subr.mxu0 0.0
    %390 = vmatpush1.msra.mxu0 0.0
    %391 = vmatprep.subr.mxu0 0.0
    %392 = vmatpush1.msra.mxu0 0.0
    %393 = vmatprep.subr.mxu0 0.0
    %394 = vmatpush1.msra.mxu0 0.0
    %395 = vmatprep.subr.mxu0 0.0
    %396 = vmatpush1.msra.mxu0 0.0
    %397 = vmatprep.subr.mxu0 0.0
    %398 = vmatpush1.msra.mxu0 0.0
    %399 = vmatprep.subr.mxu0 0.0
    %400 = vmatpush1.msra.mxu0 0.0
    %401 = vmatprep.subr.mxu0 0.0
    %402 = vmatpush1.msra.mxu0 0.0
    %403 = vmatprep.subr.mxu0 0.0
    %404 = vmatpush1.msra.mxu0 0.0
    %405 = vmatprep.subr.mxu0 0.0
    %406 = vmatpush1.msra.mxu0 0.0
    %407 = vmatprep.subr.mxu0 0.0
    %408 = vmatpush1.msra.mxu0 0.0
    %409 = vmatprep.subr.mxu0 0.0
    %410 = vmatpush1.msra.mxu0 0.0
    %411 = vmatprep.subr.mxu0 0.0
    %412 = vmatpush1.msra.mxu0 0.0
    %413 = vmatprep.subr.mxu0 0.0
    %414 = vmatpush1.msra.mxu0 0.0
    %415 = vmatprep.subr.mxu0 0.0
    %416 = vmatpush1.msra.mxu0 0.0
    %417 = vmatprep.subr.mxu0 0.0
    %418 = vmatpush1.msra.mxu0 0.0
    %419 = vmatprep.subr.mxu0 0.0
    %420 = vmatpush1.msra.mxu0 0.0
    %421 = vmatprep.subr.mxu0 0.0
    %422 = vmatpush1.msra.mxu0 0.0
    %423 = vmatprep.subr.mxu0 0.0
    %424 = vmatpush1.msra.mxu0 0.0
    %425 = vmatprep.subr.mxu0 0.0
    %426 = vmatpush1.msra.mxu0 0.0
    %427 = vmatprep.subr.mxu0 0.0
    %428 = vmatpush1.msra.mxu0 0.0
    %429 = vmatprep.subr.mxu0 0.0
    %430 = vmatpush1.msra.mxu0 0.0
    %431 = vmatprep.subr.mxu0 0.0
    %432 = vmatpush1.msra.mxu0 0.0
    %433 = vmatprep.subr.mxu0 0.0
    %434 = vmatpush1.msra.mxu0 0.0
    %435 = vmatprep.subr.mxu0 0.0
    %436 = vmatpush1.msra.mxu0 0.0
    %437 = vmatprep.subr.mxu0 0.0
    %438 = vmatpush1.msra.mxu0 0.0
    %439 = vmatprep.subr.mxu0 0.0
    %440 = vmatpush1.msra.mxu0 0.0
    %441 = vmatprep.mubr.f32.mxu0 0.0
    %442 = vmatmul.mubr.f32.gmra.mrb[0].mxu0 %v372
    %v443 = vpop.f32.mrb[0].mxu0
    %v444 = vadd.f32 %v369, %v443
    %v445 = vpop.f32.mrb[0].mxu0
    %446 = vmatprep.mubr.f32.mxu0 0.0
    %447 = vmatmul.mubr.f32.gmra.mrb[0].mxu0 %v375
    %v448 = vpop.f32.mrb[0].mxu0
    %v449 = vadd.f32 %v369, %v448
    %v450 = vpop.f32.mrb[0].mxu0
    %451 = vdwg.mxu0
    %v452 = vmul.f32 %v444, 0.14285715
    %v453 = vmul.f32 %v449, 0.14285715
    %v454 = vadd.f32 %v258, %v452
    %v455 = vadd.f32 %v259, %v453
    %s456 = scalar_lea.vmem [#allocation8], 32
    %457 = vst [vmem:[%s456] sm:$0xff] %v454
    %458 = vst [vmem:[%s456 + $0x8] sm:$0xff] %v455
    %v459 = vld [vmem:[#allocation7] sm:$0xff]
    %v460 = vld [vmem:[#allocation7 + $0x8] sm:$0xff]
    %v461 = vld [vmem:[#allocation7 + $0x10] sm:$0xff]
    %v462 = vld [vmem:[#allocation7 + $0x18] sm:$0xff]
    %v463 = vld [vmem:[#allocation7 + $0x20] sm:$0xff]
    %v464 = vld [vmem:[#allocation7 + $0x28] sm:$0xff]
    %v465 = vld [vmem:[#allocation7 + $0x30] sm:$0xff]
    %v466 = vld [vmem:[#allocation7 + $0x38] sm:$0xff]
    %v467 = vld [vmem:[#allocation7 + $0x40] sm:$0xff]
    %v468 = vld [vmem:[#allocation7 + $0x48] sm:$0xff]
    %v469 = vld [vmem:[#allocation7 + $0x50] sm:$0xff]
    %v470 = vld [vmem:[#allocation7 + $0x58] sm:$0xff]
    %v471 = vld [vmem:[#allocation7 + $0x60] sm:$0xff]
    %v472 = vld [vmem:[#allocation7 + $0x68] sm:$0xff]
    %v473 = vld [vmem:[#allocation7 + $0x70] sm:$0xff]
    %v474 = vld [vmem:[#allocation7 + $0x78] sm:$0xff]
    %v475 = vld [vmem:[%s2] sm:$0x1]
    %v476 = vmul.f32 %v475, 0.2857143
    %v478 = vlaneseq
    %v479 = vshrl.u32 %v478, 7
    %v480 = vsub.s32 0, %v479
    %v481 = vrot.slane %v476, %v480
    %483 = vmatprep.subr.mxu0 0.0
    %484 = vmatpush1.msra.mxu0 %v459
    %485 = vmatprep.subr.mxu0 0.0
    %486 = vmatpush1.msra.mxu0 %v460
    %487 = vmatprep.subr.mxu0 0.0
    %488 = vmatpush1.msra.mxu0 %v461
    %489 = vmatprep.subr.mxu0 0.0
    %490 = vmatpush1.msra.mxu0 %v462
    %491 = vmatprep.subr.mxu0 0.0
    %492 = vmatpush1.msra.mxu0 %v463
    %493 = vmatprep.subr.mxu0 0.0
    %494 = vmatpush1.msra.mxu0 %v464
    %495 = vmatprep.subr.mxu0 0.0
    %496 = vmatpush1.msra.mxu0 %v465
    %497 = vmatprep.subr.mxu0 0.0
    %498 = vmatpush1.msra.mxu0 %v466
    %499 = vmatprep.subr.mxu0 0.0
    %500 = vmatpush1.msra.mxu0 %v467
    %501 = vmatprep.subr.mxu0 0.0
    %502 = vmatpush1.msra.mxu0 %v468
    %503 = vmatprep.subr.mxu0 0.0
    %504 = vmatpush1.msra.mxu0 %v469
    %505 = vmatprep.subr.mxu0 0.0
    %506 = vmatpush1.msra.mxu0 %v470
    %507 = vmatprep.subr.mxu0 0.0
    %508 = vmatpush1.msra.mxu0 %v471
    %509 = vmatprep.subr.mxu0 0.0
    %510 = vmatpush1.msra.mxu0 %v472
    %511 = vmatprep.subr.mxu0 0.0
    %512 = vmatpush1.msra.mxu0 %v473
    %513 = vmatprep.subr.mxu0 0.0
    %514 = vmatpush1.msra.mxu0 %v474
    %515 = vmatprep.subr.mxu0 0.0
    %516 = vmatpush1.msra.mxu0 0.0
    %517 = vmatprep.subr.mxu0 0.0
    %518 = vmatpush1.msra.mxu0 0.0
    %519 = vmatprep.subr.mxu0 0.0
    %520 = vmatpush1.msra.mxu0 0.0
    %521 = vmatprep.subr.mxu0 0.0
    %522 = vmatpush1.msra.mxu0 0.0
    %523 = vmatprep.subr.mxu0 0.0
    %524 = vmatpush1.msra.mxu0 0.0
    %525 = vmatprep.subr.mxu0 0.0
    %526 = vmatpush1.msra.mxu0 0.0
    %527 = vmatprep.subr.mxu0 0.0
    %528 = vmatpush1.msra.mxu0 0.0
    %529 = vmatprep.subr.mxu0 0.0
    %530 = vmatpush1.msra.mxu0 0.0
    %531 = vmatprep.subr.mxu0 0.0
    %532 = vmatpush1.msra.mxu0 0.0
    %533 = vmatprep.subr.mxu0 0.0
    %534 = vmatpush1.msra.mxu0 0.0
    %535 = vmatprep.subr.mxu0 0.0
    %536 = vmatpush1.msra.mxu0 0.0
    %537 = vmatprep.subr.mxu0 0.0
    %538 = vmatpush1.msra.mxu0 0.0
    %539 = vmatprep.subr.mxu0 0.0
    %540 = vmatpush1.msra.mxu0 0.0
    %541 = vmatprep.subr.mxu0 0.0
    %542 = vmatpush1.msra.mxu0 0.0
    %543 = vmatprep.subr.mxu0 0.0
    %544 = vmatpush1.msra.mxu0 0.0
    %545 = vmatprep.subr.mxu0 0.0
    %546 = vmatpush1.msra.mxu0 0.0
    %547 = vmatprep.mubr.f32.mxu0 0.0
    %548 = vmatmul.mubr.f32.gmra.mrb[0].mxu0 %v454
    %v549 = vpop.f32.mrb[0].mxu0
    %v550 = vadd.f32 %v481, %v549
    %v551 = vpop.f32.mrb[0].mxu0
    %552 = vmatprep.mubr.f32.mxu0 0.0
    %553 = vmatmul.mubr.f32.gmra.mrb[0].mxu0 %v455
    %v554 = vpop.f32.mrb[0].mxu0
    %v555 = vadd.f32 %v481, %v554
    %v556 = vpop.f32.mrb[0].mxu0
    %557 = vdwg.mxu0
    %v558 = vld [vmem:[#allocation5] sm:$0xff]
    %v559 = vld [vmem:[#allocation5 + $0x8] sm:$0xff]
    %v560 = vld [vmem:[%s4] sm:$0x1]
    %v562 = vlaneseq
    %v563 = vshrl.u32 %v562, 7
    %v564 = vsub.s32 0, %v563
    %v565 = vrot.slane %v560, %v564
    %v568 = vsel %vm174, %v558, 0
    %v571 = vsel %vm174, %v559, 0
    %573 = vmatprep.subr.mxu0 0.0
    %574 = vmatpush1.msra.mxu0 %v550
    %575 = vmatprep.subr.mxu0 0.0
    %576 = vmatpush1.msra.mxu0 %v555
    %577 = vmatprep.subr.mxu0 0.0
    %578 = vmatpush1.msra.mxu0 0.0
    %579 = vmatprep.subr.mxu0 0.0
    %580 = vmatpush1.msra.mxu0 0.0
    %581 = vmatprep.subr.mxu0 0.0
    %582 = vmatpush1.msra.mxu0 0.0
    %583 = vmatprep.subr.mxu0 0.0
    %584 = vmatpush1.msra.mxu0 0.0
    %585 = vmatprep.subr.mxu0 0.0
    %586 = vmatpush1.msra.mxu0 0.0
    %587 = vmatprep.subr.mxu0 0.0
    %588 = vmatpush1.msra.mxu0 0.0
    %589 = vmatprep.subr.mxu0 0.0
    %590 = vmatpush1.msra.mxu0 0.0
    %591 = vmatprep.subr.mxu0 0.0
    %592 = vmatpush1.msra.mxu0 0.0
    %593 = vmatprep.subr.mxu0 0.0
    %594 = vmatpush1.msra.mxu0 0.0
    %595 = vmatprep.subr.mxu0 0.0
    %596 = vmatpush1.msra.mxu0 0.0
    %597 = vmatprep.subr.mxu0 0.0
    %598 = vmatpush1.msra.mxu0 0.0
    %599 = vmatprep.subr.mxu0 0.0
    %600 = vmatpush1.msra.mxu0 0.0
    %601 = vmatprep.subr.mxu0 0.0
    %602 = vmatpush1.msra.mxu0 0.0
    %603 = vmatprep.subr.mxu0 0.0
    %604 = vmatpush1.msra.mxu0 0.0
    %605 = vmatprep.subr.mxu0 0.0
    %606 = vmatpush1.msra.mxu0 0.0
    %607 = vmatprep.subr.mxu0 0.0
    %608 = vmatpush1.msra.mxu0 0.0
    %609 = vmatprep.subr.mxu0 0.0
    %610 = vmatpush1.msra.mxu0 0.0
    %611 = vmatprep.subr.mxu0 0.0
    %612 = vmatpush1.msra.mxu0 0.0
    %613 = vmatprep.subr.mxu0 0.0
    %614 = vmatpush1.msra.mxu0 0.0
    %615 = vmatprep.subr.mxu0 0.0
    %616 = vmatpush1.msra.mxu0 0.0
    %617 = vmatprep.subr.mxu0 0.0
    %618 = vmatpush1.msra.mxu0 0.0
    %619 = vmatprep.subr.mxu0 0.0
    %620 = vmatpush1.msra.mxu0 0.0
    %621 = vmatprep.subr.mxu0 0.0
    %622 = vmatpush1.msra.mxu0 0.0
    %623 = vmatprep.subr.mxu0 0.0
    %624 = vmatpush1.msra.mxu0 0.0
    %625 = vmatprep.subr.mxu0 0.0
    %626 = vmatpush1.msra.mxu0 0.0
    %627 = vmatprep.subr.mxu0 0.0
    %628 = vmatpush1.msra.mxu0 0.0
    %629 = vmatprep.subr.mxu0 0.0
    %630 = vmatpush1.msra.mxu0 0.0
    %631 = vmatprep.subr.mxu0 0.0
    %632 = vmatpush1.msra.mxu0 0.0
    %633 = vmatprep.subr.mxu0 0.0
    %634 = vmatpush1.msra.mxu0 0.0
    %635 = vmatprep.subr.mxu0 0.0
    %636 = vmatpush1.msra.mxu0 0.0
    %637 = vmatprep.mubr.f32.mxu0 0.0
    %638 = vmatmul.mubr.f32.gmra.mrb[0].mxu0 %v568
    %v639 = vpop.f32.mrb[0].mxu0
    %v640 = vadd.f32 %v565, %v639
    %v641 = vpop.f32.mrb[0].mxu0
    %642 = vmatprep.mubr.f32.mxu0 0.0
    %643 = vmatmul.mubr.f32.gmra.mrb[0].mxu0 %v571
    %v644 = vpop.f32.mrb[0].mxu0
    %v645 = vadd.f32 %v565, %v644
    %v646 = vpop.f32.mrb[0].mxu0
    %647 = vdwg.mxu0
    %v648 = vmul.f32 %v640, 0.14285715
    %v649 = vmul.f32 %v645, 0.14285715
    %v650 = vadd.f32 %v454, %v648
    %v651 = vadd.f32 %v455, %v649
    %s652 = scalar_lea.vmem [#allocation8], 48
    %653 = vst [vmem:[%s652] sm:$0xff] %v650
    %654 = vst [vmem:[%s652 + $0x8] sm:$0xff] %v651
    %v655 = vld [vmem:[#allocation7] sm:$0xff]
    %v656 = vld [vmem:[#allocation7 + $0x8] sm:$0xff]
    %v657 = vld [vmem:[#allocation7 + $0x10] sm:$0xff]
    %v658 = vld [vmem:[#allocation7 + $0x18] sm:$0xff]
    %v659 = vld [vmem:[#allocation7 + $0x20] sm:$0xff]
    %v660 = vld [vmem:[#allocation7 + $0x28] sm:$0xff]
    %v661 = vld [vmem:[#allocation7 + $0x30] sm:$0xff]
    %v662 = vld [vmem:[#allocation7 + $0x38] sm:$0xff]
    %v663 = vld [vmem:[#allocation7 + $0x40] sm:$0xff]
    %v664 = vld [vmem:[#allocation7 + $0x48] sm:$0xff]
    %v665 = vld [vmem:[#allocation7 + $0x50] sm:$0xff]
    %v666 = vld [vmem:[#allocation7 + $0x58] sm:$0xff]
    %v667 = vld [vmem:[#allocation7 + $0x60] sm:$0xff]
    %v668 = vld [vmem:[#allocation7 + $0x68] sm:$0xff]
    %v669 = vld [vmem:[#allocation7 + $0x70] sm:$0xff]
    %v670 = vld [vmem:[#allocation7 + $0x78] sm:$0xff]
    %v671 = vld [vmem:[%s2] sm:$0x1]
    %v672 = vmul.f32 %v671, 0.42857146
    %v674 = vlaneseq
    %v675 = vshrl.u32 %v674, 7
    %v676 = vsub.s32 0, %v675
    %v677 = vrot.slane %v672, %v676
    %679 = vmatprep.subr.mxu0 0.0
    %680 = vmatpush1.msra.mxu0 %v655
    %681 = vmatprep.subr.mxu0 0.0
    %682 = vmatpush1.msra.mxu0 %v656
    %683 = vmatprep.subr.mxu0 0.0
    %684 = vmatpush1.msra.mxu0 %v657
    %685 = vmatprep.subr.mxu0 0.0
    %686 = vmatpush1.msra.mxu0 %v658
    %687 = vmatprep.subr.mxu0 0.0
    %688 = vmatpush1.msra.mxu0 %v659
    %689 = vmatprep.subr.mxu0 0.0
    %690 = vmatpush1.msra.mxu0 %v660
    %691 = vmatprep.subr.mxu0 0.0
    %692 = vmatpush1.msra.mxu0 %v661
    %693 = vmatprep.subr.mxu0 0.0
    %694 = vmatpush1.msra.mxu0 %v662
    %695 = vmatprep.subr.mxu0 0.0
    %696 = vmatpush1.msra.mxu0 %v663
    %697 = vmatprep.subr.mxu0 0.0
    %698 = vmatpush1.msra.mxu0 %v664
    %699 = vmatprep.subr.mxu0 0.0
    %700 = vmatpush1.msra.mxu0 %v665
    %701 = vmatprep.subr.mxu0 0.0
    %702 = vmatpush1.msra.mxu0 %v666
    %703 = vmatprep.subr.mxu0 0.0
    %704 = vmatpush1.msra.mxu0 %v667
    %705 = vmatprep.subr.mxu0 0.0
    %706 = vmatpush1.msra.mxu0 %v668
    %707 = vmatprep.subr.mxu0 0.0
    %708 = vmatpush1.msra.mxu0 %v669
    %709 = vmatprep.subr.mxu0 0.0
    %710 = vmatpush1.msra.mxu0 %v670
    %711 = vmatprep.subr.mxu0 0.0
    %712 = vmatpush1.msra.mxu0 0.0
    %713 = vmatprep.subr.mxu0 0.0
    %714 = vmatpush1.msra.mxu0 0.0
    %715 = vmatprep.subr.mxu0 0.0
    %716 = vmatpush1.msra.mxu0 0.0
    %717 = vmatprep.subr.mxu0 0.0
    %718 = vmatpush1.msra.mxu0 0.0
    %719 = vmatprep.subr.mxu0 0.0
    %720 = vmatpush1.msra.mxu0 0.0
    %721 = vmatprep.subr.mxu0 0.0
    %722 = vmatpush1.msra.mxu0 0.0
    %723 = vmatprep.subr.mxu0 0.0
    %724 = vmatpush1.msra.mxu0 0.0
    %725 = vmatprep.subr.mxu0 0.0
    %726 = vmatpush1.msra.mxu0 0.0
    %727 = vmatprep.subr.mxu0 0.0
    %728 = vmatpush1.msra.mxu0 0.0
    %729 = vmatprep.subr.mxu0 0.0
    %730 = vmatpush1.msra.mxu0 0.0
    %731 = vmatprep.subr.mxu0 0.0
    %732 = vmatpush1.msra.mxu0 0.0
    %733 = vmatprep.subr.mxu0 0.0
    %734 = vmatpush1.msra.mxu0 0.0
    %735 = vmatprep.subr.mxu0 0.0
    %736 = vmatpush1.msra.mxu0 0.0
    %737 = vmatprep.subr.mxu0 0.0
    %738 = vmatpush1.msra.mxu0 0.0
    %739 = vmatprep.subr.mxu0 0.0
    %740 = vmatpush1.msra.mxu0 0.0
    %741 = vmatprep.subr.mxu0 0.0
    %742 = vmatpush1.msra.mxu0 0.0
    %743 = vmatprep.mubr.f32.mxu0 0.0
    %744 = vmatmul.mubr.f32.gmra.mrb[0].mxu0 %v650
    %v745 = vpop.f32.mrb[0].mxu0
    %v746 = vadd.f32 %v677, %v745
    %v747 = vpop.f32.mrb[0].mxu0
    %748 = vmatprep.mubr.f32.mxu0 0.0
    %749 = vmatmul.mubr.f32.gmra.mrb[0].mxu0 %v651
    %v750 = vpop.f32.mrb[0].mxu0
    %v751 = vadd.f32 %v677, %v750
    %v752 = vpop.f32.mrb[0].mxu0
    %753 = vdwg.mxu0
    %v754 = vld [vmem:[#allocation5] sm:$0xff]
    %v755 = vld [vmem:[#allocation5 + $0x8] sm:$0xff]
    %v756 = vld [vmem:[%s4] sm:$0x1]
    %v758 = vlaneseq
    %v759 = vshrl.u32 %v758, 7
    %v760 = vsub.s32 0, %v759
    %v761 = vrot.slane %v756, %v760
    %v764 = vsel %vm174, %v754, 0
    %v767 = vsel %vm174, %v755, 0
    %769 = vmatprep.subr.mxu0 0.0
    %770 = vmatpush1.msra.mxu0 %v746
    %771 = vmatprep.subr.mxu0 0.0
    %772 = vmatpush1.msra.mxu0 %v751
    %773 = vmatprep.subr.mxu0 0.0
    %774 = vmatpush1.msra.mxu0 0.0
    %775 = vmatprep.subr.mxu0 0.0
    %776 = vmatpush1.msra.mxu0 0.0
    %777 = vmatprep.subr.mxu0 0.0
    %778 = vmatpush1.msra.mxu0 0.0
    %779 = vmatprep.subr.mxu0 0.0
    %780 = vmatpush1.msra.mxu0 0.0
    %781 = vmatprep.subr.mxu0 0.0
    %782 = vmatpush1.msra.mxu0 0.0
    %783 = vmatprep.subr.mxu0 0.0
    %784 = vmatpush1.msra.mxu0 0.0
    %785 = vmatprep.subr.mxu0 0.0
    %786 = vmatpush1.msra.mxu0 0.0
    %787 = vmatprep.subr.mxu0 0.0
    %788 = vmatpush1.msra.mxu0 0.0
    %789 = vmatprep.subr.mxu0 0.0
    %790 = vmatpush1.msra.mxu0 0.0
    %791 = vmatprep.subr.mxu0 0.0
    %792 = vmatpush1.msra.mxu0 0.0
    %793 = vmatprep.subr.mxu0 0.0
    %794 = vmatpush1.msra.mxu0 0.0
    %795 = vmatprep.subr.mxu0 0.0
    %796 = vmatpush1.msra.mxu0 0.0
    %797 = vmatprep.subr.mxu0 0.0
    %798 = vmatpush1.msra.mxu0 0.0
    %799 = vmatprep.subr.mxu0 0.0
    %800 = vmatpush1.msra.mxu0 0.0
    %801 = vmatprep.subr.mxu0 0.0
    %802 = vmatpush1.msra.mxu0 0.0
    %803 = vmatprep.subr.mxu0 0.0
    %804 = vmatpush1.msra.mxu0 0.0
    %805 = vmatprep.subr.mxu0 0.0
    %806 = vmatpush1.msra.mxu0 0.0
    %807 = vmatprep.subr.mxu0 0.0
    %808 = vmatpush1.msra.mxu0 0.0
    %809 = vmatprep.subr.mxu0 0.0
    %810 = vmatpush1.msra.mxu0 0.0
    %811 = vmatprep.subr.mxu0 0.0
    %812 = vmatpush1.msra.mxu0 0.0
    %813 = vmatprep.subr.mxu0 0.0
    %814 = vmatpush1.msra.mxu0 0.0
    %815 = vmatprep.subr.mxu0 0.0
    %816 = vmatpush1.msra.mxu0 0.0
    %817 = vmatprep.subr.mxu0 0.0
    %818 = vmatpush1.msra.mxu0 0.0
    %819 = vmatprep.subr.mxu0 0.0
    %820 = vmatpush1.msra.mxu0 0.0
    %821 = vmatprep.subr.mxu0 0.0
    %822 = vmatpush1.msra.mxu0 0.0
    %823 = vmatprep.subr.mxu0 0.0
    %824 = vmatpush1.msra.mxu0 0.0
    %825 = vmatprep.subr.mxu0 0.0
    %826 = vmatpush1.msra.mxu0 0.0
    %827 = vmatprep.subr.mxu0 0.0
    %828 = vmatpush1.msra.mxu0 0.0
    %829 = vmatprep.subr.mxu0 0.0
    %830 = vmatpush1.msra.mxu0 0.0
    %831 = vmatprep.subr.mxu0 0.0
    %832 = vmatpush1.msra.mxu0 0.0
    %833 = vmatprep.mubr.f32.mxu0 0.0
    %834 = vmatmul.mubr.f32.gmra.mrb[0].mxu0 %v764
    %v835 = vpop.f32.mrb[0].mxu0
    %v836 = vadd.f32 %v761, %v835
    %v837 = vpop.f32.mrb[0].mxu0
    %838 = vmatprep.mubr.f32.mxu0 0.0
    %839 = vmatmul.mubr.f32.gmra.mrb[0].mxu0 %v767
    %v840 = vpop.f32.mrb[0].mxu0
    %v841 = vadd.f32 %v761, %v840
    %v842 = vpop.f32.mrb[0].mxu0
    %843 = vdwg.mxu0
    %v844 = vmul.f32 %v836, 0.14285715
    %v845 = vmul.f32 %v841, 0.14285715
    %v846 = vadd.f32 %v650, %v844
    %v847 = vadd.f32 %v651, %v845
    %s848 = scalar_lea.vmem [#allocation8], 64
    %849 = vst [vmem:[%s848] sm:$0xff] %v846
    %850 = vst [vmem:[%s848 + $0x8] sm:$0xff] %v847
    %v851 = vld [vmem:[#allocation7] sm:$0xff]
    %v852 = vld [vmem:[#allocation7 + $0x8] sm:$0xff]
    %v853 = vld [vmem:[#allocation7 + $0x10] sm:$0xff]
    %v854 = vld [vmem:[#allocation7 + $0x18] sm:$0xff]
    %v855 = vld [vmem:[#allocation7 + $0x20] sm:$0xff]
    %v856 = vld [vmem:[#allocation7 + $0x28] sm:$0xff]
    %v857 = vld [vmem:[#allocation7 + $0x30] sm:$0xff]
    %v858 = vld [vmem:[#allocation7 + $0x38] sm:$0xff]
    %v859 = vld [vmem:[#allocation7 + $0x40] sm:$0xff]
    %v860 = vld [vmem:[#allocation7 + $0x48] sm:$0xff]
    %v861 = vld [vmem:[#allocation7 + $0x50] sm:$0xff]
    %v862 = vld [vmem:[#allocation7 + $0x58] sm:$0xff]
    %v863 = vld [vmem:[#allocation7 + $0x60] sm:$0xff]
    %v864 = vld [vmem:[#allocation7 + $0x68] sm:$0xff]
    %v865 = vld [vmem:[#allocation7 + $0x70] sm:$0xff]
    %v866 = vld [vmem:[#allocation7 + $0x78] sm:$0xff]
    %v867 = vld [vmem:[%s2] sm:$0x1]
    %v868 = vmul.f32 %v867, 0.5714286
    %v870 = vlaneseq
    %v871 = vshrl.u32 %v870, 7
    %v872 = vsub.s32 0, %v871
    %v873 = vrot.slane %v868, %v872
    %875 = vmatprep.subr.mxu0 0.0
    %876 = vmatpush1.msra.mxu0 %v851
    %877 = vmatprep.subr.mxu0 0.0
    %878 = vmatpush1.msra.mxu0 %v852
    %879 = vmatprep.subr.mxu0 0.0
    %880 = vmatpush1.msra.mxu0 %v853
    %881 = vmatprep.subr.mxu0 0.0
    %882 = vmatpush1.msra.mxu0 %v854
    %883 = vmatprep.subr.mxu0 0.0
    %884 = vmatpush1.msra.mxu0 %v855
    %885 = vmatprep.subr.mxu0 0.0
    %886 = vmatpush1.msra.mxu0 %v856
    %887 = vmatprep.subr.mxu0 0.0
    %888 = vmatpush1.msra.mxu0 %v857
    %889 = vmatprep.subr.mxu0 0.0
    %890 = vmatpush1.msra.mxu0 %v858
    %891 = vmatprep.subr.mxu0 0.0
    %892 = vmatpush1.msra.mxu0 %v859
    %893 = vmatprep.subr.mxu0 0.0
    %894 = vmatpush1.msra.mxu0 %v860
    %895 = vmatprep.subr.mxu0 0.0
    %896 = vmatpush1.msra.mxu0 %v861
    %897 = vmatprep.subr.mxu0 0.0
    %898 = vmatpush1.msra.mxu0 %v862
    %899 = vmatprep.subr.mxu0 0.0
    %900 = vmatpush1.msra.mxu0 %v863
    %901 = vmatprep.subr.mxu0 0.0
    %902 = vmatpush1.msra.mxu0 %v864
    %903 = vmatprep.subr.mxu0 0.0
    %904 = vmatpush1.msra.mxu0 %v865
    %905 = vmatprep.subr.mxu0 0.0
    %906 = vmatpush1.msra.mxu0 %v866
    %907 = vmatprep.subr.mxu0 0.0
    %908 = vmatpush1.msra.mxu0 0.0
    %909 = vmatprep.subr.mxu0 0.0
    %910 = vmatpush1.msra.mxu0 0.0
    %911 = vmatprep.subr.mxu0 0.0
    %912 = vmatpush1.msra.mxu0 0.0
    %913 = vmatprep.subr.mxu0 0.0
    %914 = vmatpush1.msra.mxu0 0.0
    %915 = vmatprep.subr.mxu0 0.0
    %916 = vmatpush1.msra.mxu0 0.0
    %917 = vmatprep.subr.mxu0 0.0
    %918 = vmatpush1.msra.mxu0 0.0
    %919 = vmatprep.subr.mxu0 0.0
    %920 = vmatpush1.msra.mxu0 0.0
    %921 = vmatprep.subr.mxu0 0.0
    %922 = vmatpush1.msra.mxu0 0.0
    %923 = vmatprep.subr.mxu0 0.0
    %924 = vmatpush1.msra.mxu0 0.0
    %925 = vmatprep.subr.mxu0 0.0
    %926 = vmatpush1.msra.mxu0 0.0
    %927 = vmatprep.subr.mxu0 0.0
    %928 = vmatpush1.msra.mxu0 0.0
    %929 = vmatprep.subr.mxu0 0.0
    %930 = vmatpush1.msra.mxu0 0.0
    %931 = vmatprep.subr.mxu0 0.0
    %932 = vmatpush1.msra.mxu0 0.0
    %933 = vmatprep.subr.mxu0 0.0
    %934 = vmatpush1.msra.mxu0 0.0
    %935 = vmatprep.subr.mxu0 0.0
    %936 = vmatpush1.msra.mxu0 0.0
    %937 = vmatprep.subr.mxu0 0.0
    %938 = vmatpush1.msra.mxu0 0.0
    %939 = vmatprep.mubr.f32.mxu0 0.0
    %940 = vmatmul.mubr.f32.gmra.mrb[0].mxu0 %v846
    %v941 = vpop.f32.mrb[0].mxu0
    %v942 = vadd.f32 %v873, %v941
    %v943 = vpop.f32.mrb[0].mxu0
    %944 = vmatprep.mubr.f32.mxu0 0.0
    %945 = vmatmul.mubr.f32.gmra.mrb[0].mxu0 %v847
    %v946 = vpop.f32.mrb[0].mxu0
    %v947 = vadd.f32 %v873, %v946
    %v948 = vpop.f32.mrb[0].mxu0
    %949 = vdwg.mxu0
    %v950 = vld [vmem:[#allocation5] sm:$0xff]
    %v951 = vld [vmem:[#allocation5 + $0x8] sm:$0xff]
    %v952 = vld [vmem:[%s4] sm:$0x1]
    %v954 = vlaneseq
    %v955 = vshrl.u32 %v954, 7
    %v956 = vsub.s32 0, %v955
    %v957 = vrot.slane %v952, %v956
    %v960 = vsel %vm174, %v950, 0
    %v963 = vsel %vm174, %v951, 0
    %965 = vmatprep.subr.mxu0 0.0
    %966 = vmatpush1.msra.mxu0 %v942
    %967 = vmatprep.subr.mxu0 0.0
    %968 = vmatpush1.msra.mxu0 %v947
    %969 = vmatprep.subr.mxu0 0.0
    %970 = vmatpush1.msra.mxu0 0.0
    %971 = vmatprep.subr.mxu0 0.0
    %972 = vmatpush1.msra.mxu0 0.0
    %973 = vmatprep.subr.mxu0 0.0
    %974 = vmatpush1.msra.mxu0 0.0
    %975 = vmatprep.subr.mxu0 0.0
    %976 = vmatpush1.msra.mxu0 0.0
    %977 = vmatprep.subr.mxu0 0.0
    %978 = vmatpush1.msra.mxu0 0.0
    %979 = vmatprep.subr.mxu0 0.0
    %980 = vmatpush1.msra.mxu0 0.0
    %981 = vmatprep.subr.mxu0 0.0
    %982 = vmatpush1.msra.mxu0 0.0
    %983 = vmatprep.subr.mxu0 0.0
    %984 = vmatpush1.msra.mxu0 0.0
    %985 = vmatprep.subr.mxu0 0.0
    %986 = vmatpush1.msra.mxu0 0.0
    %987 = vmatprep.subr.mxu0 0.0
    %988 = vmatpush1.msra.mxu0 0.0
    %989 = vmatprep.subr.mxu0 0.0
    %990 = vmatpush1.msra.mxu0 0.0
    %991 = vmatprep.subr.mxu0 0.0
    %992 = vmatpush1.msra.mxu0 0.0
    %993 = vmatprep.subr.mxu0 0.0
    %994 = vmatpush1.msra.mxu0 0.0
    %995 = vmatprep.subr.mxu0 0.0
    %996 = vmatpush1.msra.mxu0 0.0
    %997 = vmatprep.subr.mxu0 0.0
    %998 = vmatpush1.msra.mxu0 0.0
    %999 = vmatprep.subr.mxu0 0.0
    %1000 = vmatpush1.msra.mxu0 0.0
    %1001 = vmatprep.subr.mxu0 0.0
    %1002 = vmatpush1.msra.mxu0 0.0
    %1003 = vmatprep.subr.mxu0 0.0
    %1004 = vmatpush1.msra.mxu0 0.0
    %1005 = vmatprep.subr.mxu0 0.0
    %1006 = vmatpush1.msra.mxu0 0.0
    %1007 = vmatprep.subr.mxu0 0.0
    %1008 = vmatpush1.msra.mxu0 0.0
    %1009 = vmatprep.subr.mxu0 0.0
    %1010 = vmatpush1.msra.mxu0 0.0
    %1011 = vmatprep.subr.mxu0 0.0
    %1012 = vmatpush1.msra.mxu0 0.0
    %1013 = vmatprep.subr.mxu0 0.0
    %1014 = vmatpush1.msra.mxu0 0.0
    %1015 = vmatprep.subr.mxu0 0.0
    %1016 = vmatpush1.msra.mxu0 0.0
    %1017 = vmatprep.subr.mxu0 0.0
    %1018 = vmatpush1.msra.mxu0 0.0
    %1019 = vmatprep.subr.mxu0 0.0
    %1020 = vmatpush1.msra.mxu0 0.0
    %1021 = vmatprep.subr.mxu0 0.0
    %1022 = vmatpush1.msra.mxu0 0.0
    %1023 = vmatprep.subr.mxu0 0.0
    %1024 = vmatpush1.msra.mxu0 0.0
    %1025 = vmatprep.subr.mxu0 0.0
    %1026 = vmatpush1.msra.mxu0 0.0
    %1027 = vmatprep.subr.mxu0 0.0
    %1028 = vmatpush1.msra.mxu0 0.0
    %1029 = vmatprep.mubr.f32.mxu0 0.0
    %1030 = vmatmul.mubr.f32.gmra.mrb[0].mxu0 %v960
    %v1031 = vpop.f32.mrb[0].mxu0
    %v1032 = vadd.f32 %v957, %v1031
    %v1033 = vpop.f32.mrb[0].mxu0
    %1034 = vmatprep.mubr.f32.mxu0 0.0
    %1035 = vmatmul.mubr.f32.gmra.mrb[0].mxu0 %v963
    %v1036 = vpop.f32.mrb[0].mxu0
    %v1037 = vadd.f32 %v957, %v1036
    %v1038 = vpop.f32.mrb[0].mxu0
    %1039 = vdwg.mxu0
    %v1040 = vmul.f32 %v1032, 0.14285715
    %v1041 = vmul.f32 %v1037, 0.14285715
    %v1042 = vadd.f32 %v846, %v1040
    %v1043 = vadd.f32 %v847, %v1041
    %s1044 = scalar_lea.vmem [#allocation8], 80
    %1045 = vst [vmem:[%s1044] sm:$0xff] %v1042
    %1046 = vst [vmem:[%s1044 + $0x8] sm:$0xff] %v1043
    %v1047 = vld [vmem:[#allocation7] sm:$0xff]
    %v1048 = vld [vmem:[#allocation7 + $0x8] sm:$0xff]
    %v1049 = vld [vmem:[#allocation7 + $0x10] sm:$0xff]
    %v1050 = vld [vmem:[#allocation7 + $0x18] sm:$0xff]
    %v1051 = vld [vmem:[#allocation7 + $0x20] sm:$0xff]
    %v1052 = vld [vmem:[#allocation7 + $0x28] sm:$0xff]
    %v1053 = vld [vmem:[#allocation7 + $0x30] sm:$0xff]
    %v1054 = vld [vmem:[#allocation7 + $0x38] sm:$0xff]
    %v1055 = vld [vmem:[#allocation7 + $0x40] sm:$0xff]
    %v1056 = vld [vmem:[#allocation7 + $0x48] sm:$0xff]
    %v1057 = vld [vmem:[#allocation7 + $0x50] sm:$0xff]
    %v1058 = vld [vmem:[#allocation7 + $0x58] sm:$0xff]
    %v1059 = vld [vmem:[#allocation7 + $0x60] sm:$0xff]
    %v1060 = vld [vmem:[#allocation7 + $0x68] sm:$0xff]
    %v1061 = vld [vmem:[#allocation7 + $0x70] sm:$0xff]
    %v1062 = vld [vmem:[#allocation7 + $0x78] sm:$0xff]
    %v1063 = vld [vmem:[%s2] sm:$0x1]
    %v1064 = vmul.f32 %v1063, 0.71428573
    %v1066 = vlaneseq
    %v1067 = vshrl.u32 %v1066, 7
    %v1068 = vsub.s32 0, %v1067
    %v1069 = vrot.slane %v1064, %v1068
    %1071 = vmatprep.subr.mxu0 0.0
    %1072 = vmatpush1.msra.mxu0 %v1047
    %1073 = vmatprep.subr.mxu0 0.0
    %1074 = vmatpush1.msra.mxu0 %v1048
    %1075 = vmatprep.subr.mxu0 0.0
    %1076 = vmatpush1.msra.mxu0 %v1049
    %1077 = vmatprep.subr.mxu0 0.0
    %1078 = vmatpush1.msra.mxu0 %v1050
    %1079 = vmatprep.subr.mxu0 0.0
    %1080 = vmatpush1.msra.mxu0 %v1051
    %1081 = vmatprep.subr.mxu0 0.0
    %1082 = vmatpush1.msra.mxu0 %v1052
    %1083 = vmatprep.subr.mxu0 0.0
    %1084 = vmatpush1.msra.mxu0 %v1053
    %1085 = vmatprep.subr.mxu0 0.0
    %1086 = vmatpush1.msra.mxu0 %v1054
    %1087 = vmatprep.subr.mxu0 0.0
    %1088 = vmatpush1.msra.mxu0 %v1055
    %1089 = vmatprep.subr.mxu0 0.0
    %1090 = vmatpush1.msra.mxu0 %v1056
    %1091 = vmatprep.subr.mxu0 0.0
    %1092 = vmatpush1.msra.mxu0 %v1057
    %1093 = vmatprep.subr.mxu0 0.0
    %1094 = vmatpush1.msra.mxu0 %v1058
    %1095 = vmatprep.subr.mxu0 0.0
    %1096 = vmatpush1.msra.mxu0 %v1059
    %1097 = vmatprep.subr.mxu0 0.0
    %1098 = vmatpush1.msra.mxu0 %v1060
    %1099 = vmatprep.subr.mxu0 0.0
    %1100 = vmatpush1.msra.mxu0 %v1061
    %1101 = vmatprep.subr.mxu0 0.0
    %1102 = vmatpush1.msra.mxu0 %v1062
    %1103 = vmatprep.subr.mxu0 0.0
    %1104 = vmatpush1.msra.mxu0 0.0
    %1105 = vmatprep.subr.mxu0 0.0
    %1106 = vmatpush1.msra.mxu0 0.0
    %1107 = vmatprep.subr.mxu0 0.0
    %1108 = vmatpush1.msra.mxu0 0.0
    %1109 = vmatprep.subr.mxu0 0.0
    %1110 = vmatpush1.msra.mxu0 0.0
    %1111 = vmatprep.subr.mxu0 0.0
    %1112 = vmatpush1.msra.mxu0 0.0
    %1113 = vmatprep.subr.mxu0 0.0
    %1114 = vmatpush1.msra.mxu0 0.0
    %1115 = vmatprep.subr.mxu0 0.0
    %1116 = vmatpush1.msra.mxu0 0.0
    %1117 = vmatprep.subr.mxu0 0.0
    %1118 = vmatpush1.msra.mxu0 0.0
    %1119 = vmatprep.subr.mxu0 0.0
    %1120 = vmatpush1.msra.mxu0 0.0
    %1121 = vmatprep.subr.mxu0 0.0
    %1122 = vmatpush1.msra.mxu0 0.0
    %1123 = vmatprep.subr.mxu0 0.0
    %1124 = vmatpush1.msra.mxu0 0.0
    %1125 = vmatprep.subr.mxu0 0.0
    %1126 = vmatpush1.msra.mxu0 0.0
    %1127 = vmatprep.subr.mxu0 0.0
    %1128 = vmatpush1.msra.mxu0 0.0
    %1129 = vmatprep.subr.mxu0 0.0
    %1130 = vmatpush1.msra.mxu0 0.0
    %1131 = vmatprep.subr.mxu0 0.0
    %1132 = vmatpush1.msra.mxu0 0.0
    %1133 = vmatprep.subr.mxu0 0.0
    %1134 = vmatpush1.msra.mxu0 0.0
    %1135 = vmatprep.mubr.f32.mxu0 0.0
    %1136 = vmatmul.mubr.f32.gmra.mrb[0].mxu0 %v1042
    %v1137 = vpop.f32.mrb[0].mxu0
    %v1138 = vadd.f32 %v1069, %v1137
    %v1139 = vpop.f32.mrb[0].mxu0
    %1140 = vmatprep.mubr.f32.mxu0 0.0
    %1141 = vmatmul.mubr.f32.gmra.mrb[0].mxu0 %v1043
    %v1142 = vpop.f32.mrb[0].mxu0
    %v1143 = vadd.f32 %v1069, %v1142
    %v1144 = vpop.f32.mrb[0].mxu0
    %1145 = vdwg.mxu0
    %v1146 = vld [vmem:[#allocation5] sm:$0xff]
    %v1147 = vld [vmem:[#allocation5 + $0x8] sm:$0xff]
    %v1148 = vld [vmem:[%s4] sm:$0x1]
    %v1150 = vlaneseq
    %v1151 = vshrl.u32 %v1150, 7
    %v1152 = vsub.s32 0, %v1151
    %v1153 = vrot.slane %v1148, %v1152
    %v1156 = vsel %vm174, %v1146, 0
    %v1159 = vsel %vm174, %v1147, 0
    %1161 = vmatprep.subr.mxu0 0.0
    %1162 = vmatpush1.msra.mxu0 %v1138
    %1163 = vmatprep.subr.mxu0 0.0
    %1164 = vmatpush1.msra.mxu0 %v1143
    %1165 = vmatprep.subr.mxu0 0.0
    %1166 = vmatpush1.msra.mxu0 0.0
    %1167 = vmatprep.subr.mxu0 0.0
    %1168 = vmatpush1.msra.mxu0 0.0
    %1169 = vmatprep.subr.mxu0 0.0
    %1170 = vmatpush1.msra.mxu0 0.0
    %1171 = vmatprep.subr.mxu0 0.0
    %1172 = vmatpush1.msra.mxu0 0.0
    %1173 = vmatprep.subr.mxu0 0.0
    %1174 = vmatpush1.msra.mxu0 0.0
    %1175 = vmatprep.subr.mxu0 0.0
    %1176 = vmatpush1.msra.mxu0 0.0
    %1177 = vmatprep.subr.mxu0 0.0
    %1178 = vmatpush1.msra.mxu0 0.0
    %1179 = vmatprep.subr.mxu0 0.0
    %1180 = vmatpush1.msra.mxu0 0.0
    %1181 = vmatprep.subr.mxu0 0.0
    %1182 = vmatpush1.msra.mxu0 0.0
    %1183 = vmatprep.subr.mxu0 0.0
    %1184 = vmatpush1.msra.mxu0 0.0
    %1185 = vmatprep.subr.mxu0 0.0
    %1186 = vmatpush1.msra.mxu0 0.0
    %1187 = vmatprep.subr.mxu0 0.0
    %1188 = vmatpush1.msra.mxu0 0.0
    %1189 = vmatprep.subr.mxu0 0.0
    %1190 = vmatpush1.msra.mxu0 0.0
    %1191 = vmatprep.subr.mxu0 0.0
    %1192 = vmatpush1.msra.mxu0 0.0
    %1193 = vmatprep.subr.mxu0 0.0
    %1194 = vmatpush1.msra.mxu0 0.0
    %1195 = vmatprep.subr.mxu0 0.0
    %1196 = vmatpush1.msra.mxu0 0.0
    %1197 = vmatprep.subr.mxu0 0.0
    %1198 = vmatpush1.msra.mxu0 0.0
    %1199 = vmatprep.subr.mxu0 0.0
    %1200 = vmatpush1.msra.mxu0 0.0
    %1201 = vmatprep.subr.mxu0 0.0
    %1202 = vmatpush1.msra.mxu0 0.0
    %1203 = vmatprep.subr.mxu0 0.0
    %1204 = vmatpush1.msra.mxu0 0.0
    %1205 = vmatprep.subr.mxu0 0.0
    %1206 = vmatpush1.msra.mxu0 0.0
    %1207 = vmatprep.subr.mxu0 0.0
    %1208 = vmatpush1.msra.mxu0 0.0
    %1209 = vmatprep.subr.mxu0 0.0
    %1210 = vmatpush1.msra.mxu0 0.0
    %1211 = vmatprep.subr.mxu0 0.0
    %1212 = vmatpush1.msra.mxu0 0.0
    %1213 = vmatprep.subr.mxu0 0.0
    %1214 = vmatpush1.msra.mxu0 0.0
    %1215 = vmatprep.subr.mxu0 0.0
    %1216 = vmatpush1.msra.mxu0 0.0
    %1217 = vmatprep.subr.mxu0 0.0
    %1218 = vmatpush1.msra.mxu0 0.0
    %1219 = vmatprep.subr.mxu0 0.0
    %1220 = vmatpush1.msra.mxu0 0.0
    %1221 = vmatprep.subr.mxu0 0.0
    %1222 = vmatpush1.msra.mxu0 0.0
    %1223 = vmatprep.subr.mxu0 0.0
    %1224 = vmatpush1.msra.mxu0 0.0
    %1225 = vmatprep.mubr.f32.mxu0 0.0
    %1226 = vmatmul.mubr.f32.gmra.mrb[0].mxu0 %v1156
    %v1227 = vpop.f32.mrb[0].mxu0
    %v1228 = vadd.f32 %v1153, %v1227
    %v1229 = vpop.f32.mrb[0].mxu0
    %1230 = vmatprep.mubr.f32.mxu0 0.0
    %1231 = vmatmul.mubr.f32.gmra.mrb[0].mxu0 %v1159
    %v1232 = vpop.f32.mrb[0].mxu0
    %v1233 = vadd.f32 %v1153, %v1232
    %v1234 = vpop.f32.mrb[0].mxu0
    %1235 = vdwg.mxu0
    %v1236 = vmul.f32 %v1228, 0.14285715
    %v1237 = vmul.f32 %v1233, 0.14285715
    %v1238 = vadd.f32 %v1042, %v1236
    %v1239 = vadd.f32 %v1043, %v1237
    %s1240 = scalar_lea.vmem [#allocation8], 96
    %1241 = vst [vmem:[%s1240] sm:$0xff] %v1238
    %1242 = vst [vmem:[%s1240 + $0x8] sm:$0xff] %v1239
    %v1243 = vld [vmem:[#allocation7] sm:$0xff]
    %v1244 = vld [vmem:[#allocation7 + $0x8] sm:$0xff]
    %v1245 = vld [vmem:[#allocation7 + $0x10] sm:$0xff]
    %v1246 = vld [vmem:[#allocation7 + $0x18] sm:$0xff]
    %v1247 = vld [vmem:[#allocation7 + $0x20] sm:$0xff]
    %v1248 = vld [vmem:[#allocation7 + $0x28] sm:$0xff]
    %v1249 = vld [vmem:[#allocation7 + $0x30] sm:$0xff]
    %v1250 = vld [vmem:[#allocation7 + $0x38] sm:$0xff]
    %v1251 = vld [vmem:[#allocation7 + $0x40] sm:$0xff]
    %v1252 = vld [vmem:[#allocation7 + $0x48] sm:$0xff]
    %v1253 = vld [vmem:[#allocation7 + $0x50] sm:$0xff]
    %v1254 = vld [vmem:[#allocation7 + $0x58] sm:$0xff]
    %v1255 = vld [vmem:[#allocation7 + $0x60] sm:$0xff]
    %v1256 = vld [vmem:[#allocation7 + $0x68] sm:$0xff]
    %v1257 = vld [vmem:[#allocation7 + $0x70] sm:$0xff]
    %v1258 = vld [vmem:[#allocation7 + $0x78] sm:$0xff]
    %v1259 = vld [vmem:[%s2] sm:$0x1]
    %v1260 = vmul.f32 %v1259, 0.8571429
    %v1262 = vlaneseq
    %v1263 = vshrl.u32 %v1262, 7
    %v1264 = vsub.s32 0, %v1263
    %v1265 = vrot.slane %v1260, %v1264
    %1267 = vmatprep.subr.mxu0 0.0
    %1268 = vmatpush1.msra.mxu0 %v1243
    %1269 = vmatprep.subr.mxu0 0.0
    %1270 = vmatpush1.msra.mxu0 %v1244
    %1271 = vmatprep.subr.mxu0 0.0
    %1272 = vmatpush1.msra.mxu0 %v1245
    %1273 = vmatprep.subr.mxu0 0.0
    %1274 = vmatpush1.msra.mxu0 %v1246
    %1275 = vmatprep.subr.mxu0 0.0
    %1276 = vmatpush1.msra.mxu0 %v1247
    %1277 = vmatprep.subr.mxu0 0.0
    %1278 = vmatpush1.msra.mxu0 %v1248
    %1279 = vmatprep.subr.mxu0 0.0
    %1280 = vmatpush1.msra.mxu0 %v1249
    %1281 = vmatprep.subr.mxu0 0.0
    %1282 = vmatpush1.msra.mxu0 %v1250
    %1283 = vmatprep.subr.mxu0 0.0
    %1284 = vmatpush1.msra.mxu0 %v1251
    %1285 = vmatprep.subr.mxu0 0.0
    %1286 = vmatpush1.msra.mxu0 %v1252
    %1287 = vmatprep.subr.mxu0 0.0
    %1288 = vmatpush1.msra.mxu0 %v1253
    %1289 = vmatprep.subr.mxu0 0.0
    %1290 = vmatpush1.msra.mxu0 %v1254
    %1291 = vmatprep.subr.mxu0 0.0
    %1292 = vmatpush1.msra.mxu0 %v1255
    %1293 = vmatprep.subr.mxu0 0.0
    %1294 = vmatpush1.msra.mxu0 %v1256
    %1295 = vmatprep.subr.mxu0 0.0
    %1296 = vmatpush1.msra.mxu0 %v1257
    %1297 = vmatprep.subr.mxu0 0.0
    %1298 = vmatpush1.msra.mxu0 %v1258
    %1299 = vmatprep.subr.mxu0 0.0
    %1300 = vmatpush1.msra.mxu0 0.0
    %1301 = vmatprep.subr.mxu0 0.0
    %1302 = vmatpush1.msra.mxu0 0.0
    %1303 = vmatprep.subr.mxu0 0.0
    %1304 = vmatpush1.msra.mxu0 0.0
    %1305 = vmatprep.subr.mxu0 0.0
    %1306 = vmatpush1.msra.mxu0 0.0
    %1307 = vmatprep.subr.mxu0 0.0
    %1308 = vmatpush1.msra.mxu0 0.0
    %1309 = vmatprep.subr.mxu0 0.0
    %1310 = vmatpush1.msra.mxu0 0.0
    %1311 = vmatprep.subr.mxu0 0.0
    %1312 = vmatpush1.msra.mxu0 0.0
    %1313 = vmatprep.subr.mxu0 0.0
    %1314 = vmatpush1.msra.mxu0 0.0
    %1315 = vmatprep.subr.mxu0 0.0
    %1316 = vmatpush1.msra.mxu0 0.0
    %1317 = vmatprep.subr.mxu0 0.0
    %1318 = vmatpush1.msra.mxu0 0.0
    %1319 = vmatprep.subr.mxu0 0.0
    %1320 = vmatpush1.msra.mxu0 0.0
    %1321 = vmatprep.subr.mxu0 0.0
    %1322 = vmatpush1.msra.mxu0 0.0
    %1323 = vmatprep.subr.mxu0 0.0
    %1324 = vmatpush1.msra.mxu0 0.0
    %1325 = vmatprep.subr.mxu0 0.0
    %1326 = vmatpush1.msra.mxu0 0.0
    %1327 = vmatprep.subr.mxu0 0.0
    %1328 = vmatpush1.msra.mxu0 0.0
    %1329 = vmatprep.subr.mxu0 0.0
    %1330 = vmatpush1.msra.mxu0 0.0
    %1331 = vmatprep.mubr.f32.mxu0 0.0
    %1332 = vmatmul.mubr.f32.gmra.mrb[0].mxu0 %v1238
    %v1333 = vpop.f32.mrb[0].mxu0
    %v1334 = vadd.f32 %v1265, %v1333
    %v1335 = vpop.f32.mrb[0].mxu0
    %1336 = vmatprep.mubr.f32.mxu0 0.0
    %1337 = vmatmul.mubr.f32.gmra.mrb[0].mxu0 %v1239
    %v1338 = vpop.f32.mrb[0].mxu0
    %v1339 = vadd.f32 %v1265, %v1338
    %v1340 = vpop.f32.mrb[0].mxu0
    %1341 = vdwg.mxu0
    %v1342 = vld [vmem:[#allocation5] sm:$0xff]
    %v1343 = vld [vmem:[#allocation5 + $0x8] sm:$0xff]
    %v1344 = vld [vmem:[%s4] sm:$0x1]
    %v1346 = vlaneseq
    %v1347 = vshrl.u32 %v1346, 7
    %v1348 = vsub.s32 0, %v1347
    %v1349 = vrot.slane %v1344, %v1348
    %v1352 = vsel %vm174, %v1342, 0
    %v1355 = vsel %vm174, %v1343, 0
    %1357 = vmatprep.subr.mxu0 0.0
    %1358 = vmatpush1.msra.mxu0 %v1334
    %1359 = vmatprep.subr.mxu0 0.0
    %1360 = vmatpush1.msra.mxu0 %v1339
    %1361 = vmatprep.subr.mxu0 0.0
    %1362 = vmatpush1.msra.mxu0 0.0
    %1363 = vmatprep.subr.mxu0 0.0
    %1364 = vmatpush1.msra.mxu0 0.0
    %1365 = vmatprep.subr.mxu0 0.0
    %1366 = vmatpush1.msra.mxu0 0.0
    %1367 = vmatprep.subr.mxu0 0.0
    %1368 = vmatpush1.msra.mxu0 0.0
    %1369 = vmatprep.subr.mxu0 0.0
    %1370 = vmatpush1.msra.mxu0 0.0
    %1371 = vmatprep.subr.mxu0 0.0
    %1372 = vmatpush1.msra.mxu0 0.0
    %1373 = vmatprep.subr.mxu0 0.0
    %1374 = vmatpush1.msra.mxu0 0.0
    %1375 = vmatprep.subr.mxu0 0.0
    %1376 = vmatpush1.msra.mxu0 0.0
    %1377 = vmatprep.subr.mxu0 0.0
    %1378 = vmatpush1.msra.mxu0 0.0
    %1379 = vmatprep.subr.mxu0 0.0
    %1380 = vmatpush1.msra.mxu0 0.0
    %1381 = vmatprep.subr.mxu0 0.0
    %1382 = vmatpush1.msra.mxu0 0.0
    %1383 = vmatprep.subr.mxu0 0.0
    %1384 = vmatpush1.msra.mxu0 0.0
    %1385 = vmatprep.subr.mxu0 0.0
    %1386 = vmatpush1.msra.mxu0 0.0
    %1387 = vmatprep.subr.mxu0 0.0
    %1388 = vmatpush1.msra.mxu0 0.0
    %1389 = vmatprep.subr.mxu0 0.0
    %1390 = vmatpush1.msra.mxu0 0.0
    %1391 = vmatprep.subr.mxu0 0.0
    %1392 = vmatpush1.msra.mxu0 0.0
    %1393 = vmatprep.subr.mxu0 0.0
    %1394 = vmatpush1.msra.mxu0 0.0
    %1395 = vmatprep.subr.mxu0 0.0
    %1396 = vmatpush1.msra.mxu0 0.0
    %1397 = vmatprep.subr.mxu0 0.0
    %1398 = vmatpush1.msra.mxu0 0.0
    %1399 = vmatprep.subr.mxu0 0.0
    %1400 = vmatpush1.msra.mxu0 0.0
    %1401 = vmatprep.subr.mxu0 0.0
    %1402 = vmatpush1.msra.mxu0 0.0
    %1403 = vmatprep.subr.mxu0 0.0
    %1404 = vmatpush1.msra.mxu0 0.0
    %1405 = vmatprep.subr.mxu0 0.0
    %1406 = vmatpush1.msra.mxu0 0.0
    %1407 = vmatprep.subr.mxu0 0.0
    %1408 = vmatpush1.msra.mxu0 0.0
    %1409 = vmatprep.subr.mxu0 0.0
    %1410 = vmatpush1.msra.mxu0 0.0
    %1411 = vmatprep.subr.mxu0 0.0
    %1412 = vmatpush1.msra.mxu0 0.0
    %1413 = vmatprep.subr.mxu0 0.0
    %1414 = vmatpush1.msra.mxu0 0.0
    %1415 = vmatprep.subr.mxu0 0.0
    %1416 = vmatpush1.msra.mxu0 0.0
    %1417 = vmatprep.subr.mxu0 0.0
    %1418 = vmatpush1.msra.mxu0 0.0
    %1419 = vmatprep.subr.mxu0 0.0
    %1420 = vmatpush1.msra.mxu0 0.0
    %1421 = vmatprep.mubr.f32.mxu0 0.0
    %1422 = vmatmul.mubr.f32.gmra.mrb[0].mxu0 %v1352
    %v1423 = vpop.f32.mrb[0].mxu0
    %v1424 = vadd.f32 %v1349, %v1423
    %v1425 = vpop.f32.mrb[0].mxu0
    %1426 = vmatprep.mubr.f32.mxu0 0.0
    %1427 = vmatmul.mubr.f32.gmra.mrb[0].mxu0 %v1355
    %v1428 = vpop.f32.mrb[0].mxu0
    %v1429 = vadd.f32 %v1349, %v1428
    %v1430 = vpop.f32.mrb[0].mxu0
    %1431 = vdwg.mxu0
    %v1432 = vmul.f32 %v1424, 0.14285715
    %v1433 = vmul.f32 %v1429, 0.14285715
    %v1434 = vadd.f32 %v1238, %v1432
    %v1435 = vadd.f32 %v1239, %v1433
    %s1436 = scalar_lea.vmem [#allocation8], 112
    %1437 = vst [vmem:[%s1436] sm:$0xff] %v1434
    %1438 = vst [vmem:[%s1436 + $0x8] sm:$0xff] %v1435
    // Predicated region
    $region34: #{tpu_custom_call.1} parent=1 // pred_check
      _
    $region35: #{tpu_custom_call.1} parent=1 // pred_check_branch
      %1440 = sbr.rel (0) target = $region37
    $region36: #{tpu_custom_call.1} parent=1 // pred_region
      %s1442 = ssub.s32 2048, 2048
      %1443 = vsyncadd [#allocation4], %s1442
      %s1444 = sshll.u32 [#allocation8], 4
      %s1445 = int_to_ptr.vmem [resolvable:$true] %s1444
      %1450 = dma.vmem_to_hbm [thread:$0]  %s1445, 2048, %s5, [#allocation4], 128, 128, 8
    $region37: #{tpu_custom_call.1} parent=1 // pred_fallthru
      _
    // Predicated region
    $region38: #{tpu_custom_call.1} parent=1 // pred_check
      _
    $region39: #{tpu_custom_call.1} parent=1 // pred_check_branch
      %1452 = sbr.rel (0) target = $region41
    $region40: #{tpu_custom_call.1} parent=1 // pred_region
      %1453 = dma.done [#allocation4], 2048
    $region41: #{tpu_custom_call.1} parent=1 // pred_fallthru
      _
    %1454 = vsyncpa [#allocation3], 1
    %1455 = vsyncpa [#allocation6], 1
    %1456 = vsyncpa [#allocation4], 1

</llo_original>
